<compile_context>
chip_gen: v7x
topology: tpu7x:2x2x1
jax: 0.10.0
libtpu: 0.0.40
codegen_flags: <defaults>
</compile_context>

<pallas_src>
import jax
import jax.numpy as jnp
from jax import lax
from jax.experimental import pallas as pl
from jax.experimental.pallas import tpu as pltpu

N_CELLS = 512


def _default_compute_dtype():
    """bf16 VALU/EUP path on v6e / v7x; exact f32 elsewhere (v5e has no bf16 VPU/EUP)."""
    try:
        kind = jax.devices()[0].device_kind.lower()
    except Exception:
        return jnp.float32
    if ("v6" in kind) or ("v7" in kind) or ("7x" in kind):
        return jnp.bfloat16
    return jnp.float32


def _pick_chunk(tile, compute_dtype):
    """Largest power-of-two cell chunk keeping one (chunk, tile) stage <= ~256 KiB."""
    bytes_per = 2 if compute_dtype == jnp.bfloat16 else 4
    target = max(8, (256 * 1024 // bytes_per) // max(tile, 1))
    chunk = 8
    while chunk * 2 <= min(target, 128):
        chunk *= 2
    return chunk  # power of two in [8, 128]; always divides 512


def _make_widenet_kernel(tile, chunk, compute_dtype, use_mxu):
    n_chunks = N_CELLS // chunk

    def kernel(x_ref, w1_ref, b1_ref, w2_ref, b2_ref, o_ref):
        # x_ref:  (1, tile)               lane-dense batch tile
        # w1_ref: (512, 1)                cells on sublanes (VMEM resident)
        # b1_ref: (512, 1)                (VMEM resident)
        # w2_ref: (n_chunks, chunk) f32   [MXU path]  row c = cells [c*chunk, (c+1)*chunk)
        #         (512, 1)          f32   [VPU path]  column layout
        # b2_ref: (1,) in SMEM            scalar bias
        # o_ref:  (1, tile)               lane-dense output tile
        x = x_ref[...].astype(compute_dtype)                                 # (1, tile)

        def body(c, acc):
            start = pl.multiple_of(c * chunk, chunk)
            w1c = w1_ref[pl.ds(start, chunk), :].astype(compute_dtype)       # (chunk, 1)
            b1c = b1_ref[pl.ds(start, chunk), :].astype(compute_dtype)       # (chunk, 1)
            # Layer 1: broadcast FMA on the VPU + tanh on the EUP (no K=1 MXU matmul).
            h = jnp.tanh(w1c * x + b1c)                                      # (chunk, tile)
            if use_mxu:
                # Layer 2 on the otherwise-idle MXU; exact f32 accumulation.
                w2c = w2_ref[pl.ds(c, 1), :].astype(compute_dtype)           # (1, chunk)
                part = jnp.dot(w2c, h, preferred_element_type=jnp.float32)   # (1, tile) f32
            else:
                # Layer 2 on VPU/XLU: elementwise scale + sublane (cell-axis) reduce, f32.
                w2c = w2_ref[pl.ds(start, chunk), :]                         # (chunk, 1) f32
                part = jnp.sum(h * w2c, axis=0, keepdims=True)               # (1, tile) f32
            return acc + part

        acc = lax.fori_loop(0, n_chunks, body,
                            jnp.zeros((1, tile), jnp.float32), unroll=True)
        o_ref[...] = (acc + b2_ref[0]).astype(o_ref.dtype)

    return kernel


def widenet_forward(x, w1, b1, w2, b2, *, tile_n=4096, chunk=None, compute_dtype=None):
    """x: (N, 1); w1: (512, 1); b1: (512,); w2: (1, 512); b2: (1,).

    Matches PyTorch nn.Sequential(Linear(1, 512), Tanh(), Linear(512, 1)).  On v6e/v7x
    layer 1 runs in bf16 (layer-2 accumulation stays exact f32); elsewhere fully f32.
    """
    n = x.shape[0]
    if compute_dtype is None:
        compute_dtype = _default_compute_dtype()
    use_mxu = compute_dtype == jnp.bfloat16

    # Lane-dense batch layout: (N, 1) -> (1, N), padded to a multiple of the tile.
    x_row = x.reshape(1, n).astype(jnp.float32)
    n_128 = ((n + 127) // 128) * 128
    tile = max(128, min((tile_n // 128) * 128, n_128))
    # Keep >= 2 grid steps whenever the batch allows, so the "parallel" batch axis can
    # span both v7x TensorCores (and DMA/compute overlap on 1-TC chips).
    if n_128 >= 256:
        tile = min(tile, max(128, (n_128 // 2 // 128) * 128))
    n_pad = ((n + tile - 1) // tile) * tile
    if n_pad != n:
        x_row = jnp.pad(x_row, ((0, 0), (0, n_pad - n)))

    if chunk is None:
        chunk = _pick_chunk(tile, compute_dtype)
    assert N_CELLS % chunk == 0

    # Parameters in kernel-friendly shapes (cells on sublanes; resident in VMEM).
    w1_c = w1.reshape(N_CELLS, 1).astype(jnp.float32)
    b1_c = b1.reshape(N_CELLS, 1).astype(jnp.float32)
    if use_mxu:
        # Chunk-row layout for the MXU LHS: row c holds cells [c*chunk, (c+1)*chunk).
        w2_c = w2.reshape(N_CELLS // chunk, chunk).astype(jnp.float32)
        w2_spec = pl.BlockSpec((N_CELLS // chunk, chunk), lambda i: (0, 0))
    else:
        w2_c = w2.reshape(N_CELLS, 1).astype(jnp.float32)
        w2_spec = pl.BlockSpec((N_CELLS, 1), lambda i: (0, 0))
    b2_s = b2.reshape(1).astype(jnp.float32)

    kernel = _make_widenet_kernel(tile, chunk, compute_dtype, use_mxu)

    grid = (n_pad // tile,)
    out_row = pl.pallas_call(
        kernel,
        out_shape=jax.ShapeDtypeStruct((1, n_pad), jnp.float32),
        grid_spec=pltpu.PrefetchScalarGridSpec(
            num_scalar_prefetch=0,
            grid=grid,
            in_specs=[
                pl.BlockSpec((1, tile), lambda i: (0, i)),            # x tile (lane-dense)
                pl.BlockSpec((N_CELLS, 1), lambda i: (0, 0)),         # w1 (resident)
                pl.BlockSpec((N_CELLS, 1), lambda i: (0, 0)),         # b1 (resident)
                w2_spec,                                              # w2 (resident)
                pl.BlockSpec(memory_space=pltpu.MemorySpace.SMEM),    # b2 scalar
            ],
            out_specs=pl.BlockSpec((1, tile), lambda i: (0, i)),
        ),
        compiler_params=pltpu.CompilerParams(
            # TODO(synk): try pltpu.CORE_PARALLEL on this axis on v7x once verified it
            # also compiles on single-TC chips; plain "parallel" is safe everywhere.
            dimension_semantics=("parallel",),
            vmem_limit_bytes=32 * 1024 * 1024,
        ),
    )(x_row, w1_c, b1_c, w2_c, b2_s)

    return out_row[:, :n].reshape(n, 1)


if __name__ == "__main__":
    key = jax.random.PRNGKey(0)
    k_x, k_w1, k_b1, k_w2, k_b2 = jax.random.split(key, 5)

    # Small shapes consistent with the module: WideNet maps (N, 1) -> (N, 1).
    #   Linear(1, 512): weight (512, 1), bias (512,)
    #   Linear(512, 1): weight (1, 512), bias (1,)
    # N=1000 (not a multiple of 128) exercises padding + a multi-step grid; large-N perf
    # runs should just use the defaults (tile_n=4096), not a hand-shrunk tile.
    N = 1000
    x = jax.random.normal(k_x, (N, 1), dtype=jnp.float32)
    w1 = jax.random.normal(k_w1, (N_CELLS, 1), dtype=jnp.float32) * 0.5
    b1 = jax.random.normal(k_b1, (N_CELLS,), dtype=jnp.float32) * 0.1
    w2 = jax.random.normal(k_w2, (1, N_CELLS), dtype=jnp.float32) * 0.05
    b2 = jax.random.normal(k_b2, (1,), dtype=jnp.float32) * 0.1

    compute_dtype = _default_compute_dtype()
    out = widenet_forward(x, w1, b1, w2, b2, compute_dtype=compute_dtype)
    out = jax.block_until_ready(out)

    # Pure-JAX f32 reference (fully elementwise: no matmul-precision ambiguity).
    h_ref = jnp.tanh(x * w1[:, 0][None, :] + b1[None, :])                # (N, 512)
    ref = (h_ref * w2[0][None, :]).sum(axis=1, keepdims=True) + b2       # (N, 1)

    # f32 path is (near-)exact; the bf16 layer-1 path needs a looser tolerance.
    tol = 3e-2 if compute_dtype == jnp.bfloat16 else 2e-5
    assert out.shape == (N, 1)
    assert jnp.allclose(out, ref, atol=tol, rtol=tol), "mismatch vs reference"

    print("KERNEL_OK")
</pallas_src>

<mosaic_0001>
module attributes {stable_mosaic.version = 11 : i64} {
  func.func @kernel(%arg0: i32, %arg1: memref<1x512xf32, #tpu.memory_space<vmem>>, %arg2: memref<512x1xf32, #tpu.memory_space<vmem>>, %arg3: memref<512x1xf32, #tpu.memory_space<vmem>>, %arg4: memref<512x1xf32, #tpu.memory_space<vmem>>, %arg5: memref<1xf32, #tpu.memory_space<smem>>, %arg6: memref<1x512xf32, #tpu.memory_space<vmem>>) attributes {dimension_semantics = [#tpu.dimension_semantics<parallel>], iteration_bounds = array<i64: 2>, scalar_prefetch = 0 : i64, scratch_operands = 0 : i64, tpu.core_type = #tpu.core_type<tc>, window_params = [{transform_indices = @transform_0, window_bounds = array<i64: 1, 512>}, {pipeline_mode = #tpu.pipeline_mode<synchronous>, transform_indices = @transform_1, window_bounds = array<i64: 512, 1>}, {pipeline_mode = #tpu.pipeline_mode<synchronous>, transform_indices = @transform_2, window_bounds = array<i64: 512, 1>}, {pipeline_mode = #tpu.pipeline_mode<synchronous>, transform_indices = @transform_3, window_bounds = array<i64: 512, 1>}, {transform_indices = @transform_4, window_bounds = array<i64: 1>}, {transform_indices = @transform_5, window_bounds = array<i64: 1, 512>}]} {
    %c0 = arith.constant 0 : index
    %c0_0 = arith.constant 0 : index
    %0 = vector.load %arg1[%c0, %c0_0] : memref<1x512xf32, #tpu.memory_space<vmem>>, vector<1x512xf32>
    %cst = arith.constant 0.000000e+00 : f32
    %1 = vector.broadcast %cst : f32 to vector<1x512xf32>
    %c0_i32 = arith.constant 0 : i32
    %c128_i32 = arith.constant 128 : i32
    %2 = arith.muli %c0_i32, %c128_i32 : i32
    %3 = tpu.assume_multiple %2, 128 : i32
    %4 = arith.index_cast %3 : i32 to index
    %c0_1 = arith.constant 0 : index
    %5 = vector.load %arg2[%4, %c0_1] : memref<512x1xf32, #tpu.memory_space<vmem>>, vector<128x1xf32>
    %6 = arith.index_cast %3 : i32 to index
    %c0_2 = arith.constant 0 : index
    %7 = vector.load %arg3[%6, %c0_2] : memref<512x1xf32, #tpu.memory_space<vmem>>, vector<128x1xf32>
    %8 = vector.broadcast %5 : vector<128x1xf32> to vector<128x512xf32>
    %9 = vector.broadcast %0 : vector<1x512xf32> to vector<128x512xf32>
    %10 = arith.mulf %8, %9 : vector<128x512xf32>
    %11 = vector.broadcast %7 : vector<128x1xf32> to vector<128x512xf32>
    %12 = arith.addf %10, %11 : vector<128x512xf32>
    %13 = math.tanh %12 : vector<128x512xf32>
    %14 = arith.index_cast %3 : i32 to index
    %c0_3 = arith.constant 0 : index
    %15 = vector.load %arg4[%14, %c0_3] : memref<512x1xf32, #tpu.memory_space<vmem>>, vector<128x1xf32>
    %16 = vector.broadcast %15 : vector<128x1xf32> to vector<128x512xf32>
    %17 = arith.mulf %13, %16 : vector<128x512xf32>
    %cst_4 = arith.constant dense<0.000000e+00> : vector<512xf32>
    %18 = vector.multi_reduction <add>, %17, %cst_4 [0] : vector<128x512xf32> to vector<512xf32>
    %19 = vector.shape_cast %18 : vector<512xf32> to vector<1x512xf32>
    %20 = arith.addf %1, %19 : vector<1x512xf32>
    %c1_i32 = arith.constant 1 : i32
    %c128_i32_5 = arith.constant 128 : i32
    %21 = arith.muli %c1_i32, %c128_i32_5 : i32
    %22 = tpu.assume_multiple %21, 128 : i32
    %23 = arith.index_cast %22 : i32 to index
    %c0_6 = arith.constant 0 : index
    %24 = vector.load %arg2[%23, %c0_6] : memref<512x1xf32, #tpu.memory_space<vmem>>, vector<128x1xf32>
    %25 = arith.index_cast %22 : i32 to index
    %c0_7 = arith.constant 0 : index
    %26 = vector.load %arg3[%25, %c0_7] : memref<512x1xf32, #tpu.memory_space<vmem>>, vector<128x1xf32>
    %27 = vector.broadcast %24 : vector<128x1xf32> to vector<128x512xf32>
    %28 = vector.broadcast %0 : vector<1x512xf32> to vector<128x512xf32>
    %29 = arith.mulf %27, %28 : vector<128x512xf32>
    %30 = vector.broadcast %26 : vector<128x1xf32> to vector<128x512xf32>
    %31 = arith.addf %29, %30 : vector<128x512xf32>
    %32 = math.tanh %31 : vector<128x512xf32>
    %33 = arith.index_cast %22 : i32 to index
    %c0_8 = arith.constant 0 : index
    %34 = vector.load %arg4[%33, %c0_8] : memref<512x1xf32, #tpu.memory_space<vmem>>, vector<128x1xf32>
    %35 = vector.broadcast %34 : vector<128x1xf32> to vector<128x512xf32>
    %36 = arith.mulf %32, %35 : vector<128x512xf32>
    %cst_9 = arith.constant dense<0.000000e+00> : vector<512xf32>
    %37 = vector.multi_reduction <add>, %36, %cst_9 [0] : vector<128x512xf32> to vector<512xf32>
    %38 = vector.shape_cast %37 : vector<512xf32> to vector<1x512xf32>
    %39 = arith.addf %20, %38 : vector<1x512xf32>
    %c2_i32 = arith.constant 2 : i32
    %c128_i32_10 = arith.constant 128 : i32
    %40 = arith.muli %c2_i32, %c128_i32_10 : i32
    %41 = tpu.assume_multiple %40, 128 : i32
    %42 = arith.index_cast %41 : i32 to index
    %c0_11 = arith.constant 0 : index
    %43 = vector.load %arg2[%42, %c0_11] : memref<512x1xf32, #tpu.memory_space<vmem>>, vector<128x1xf32>
    %44 = arith.index_cast %41 : i32 to index
    %c0_12 = arith.constant 0 : index
    %45 = vector.load %arg3[%44, %c0_12] : memref<512x1xf32, #tpu.memory_space<vmem>>, vector<128x1xf32>
    %46 = vector.broadcast %43 : vector<128x1xf32> to vector<128x512xf32>
    %47 = vector.broadcast %0 : vector<1x512xf32> to vector<128x512xf32>
    %48 = arith.mulf %46, %47 : vector<128x512xf32>
    %49 = vector.broadcast %45 : vector<128x1xf32> to vector<128x512xf32>
    %50 = arith.addf %48, %49 : vector<128x512xf32>
    %51 = math.tanh %50 : vector<128x512xf32>
    %52 = arith.index_cast %41 : i32 to index
    %c0_13 = arith.constant 0 : index
    %53 = vector.load %arg4[%52, %c0_13] : memref<512x1xf32, #tpu.memory_space<vmem>>, vector<128x1xf32>
    %54 = vector.broadcast %53 : vector<128x1xf32> to vector<128x512xf32>
    %55 = arith.mulf %51, %54 : vector<128x512xf32>
    %cst_14 = arith.constant dense<0.000000e+00> : vector<512xf32>
    %56 = vector.multi_reduction <add>, %55, %cst_14 [0] : vector<128x512xf32> to vector<512xf32>
    %57 = vector.shape_cast %56 : vector<512xf32> to vector<1x512xf32>
    %58 = arith.addf %39, %57 : vector<1x512xf32>
    %c3_i32 = arith.constant 3 : i32
    %c128_i32_15 = arith.constant 128 : i32
    %59 = arith.muli %c3_i32, %c128_i32_15 : i32
    %60 = tpu.assume_multiple %59, 128 : i32
    %61 = arith.index_cast %60 : i32 to index
    %c0_16 = arith.constant 0 : index
    %62 = vector.load %arg2[%61, %c0_16] : memref<512x1xf32, #tpu.memory_space<vmem>>, vector<128x1xf32>
    %63 = arith.index_cast %60 : i32 to index
    %c0_17 = arith.constant 0 : index
    %64 = vector.load %arg3[%63, %c0_17] : memref<512x1xf32, #tpu.memory_space<vmem>>, vector<128x1xf32>
    %65 = vector.broadcast %62 : vector<128x1xf32> to vector<128x512xf32>
    %66 = vector.broadcast %0 : vector<1x512xf32> to vector<128x512xf32>
    %67 = arith.mulf %65, %66 : vector<128x512xf32>
    %68 = vector.broadcast %64 : vector<128x1xf32> to vector<128x512xf32>
    %69 = arith.addf %67, %68 : vector<128x512xf32>
    %70 = math.tanh %69 : vector<128x512xf32>
    %71 = arith.index_cast %60 : i32 to index
    %c0_18 = arith.constant 0 : index
    %72 = vector.load %arg4[%71, %c0_18] : memref<512x1xf32, #tpu.memory_space<vmem>>, vector<128x1xf32>
    %73 = vector.broadcast %72 : vector<128x1xf32> to vector<128x512xf32>
    %74 = arith.mulf %70, %73 : vector<128x512xf32>
    %cst_19 = arith.constant dense<0.000000e+00> : vector<512xf32>
    %75 = vector.multi_reduction <add>, %74, %cst_19 [0] : vector<128x512xf32> to vector<512xf32>
    %76 = vector.shape_cast %75 : vector<512xf32> to vector<1x512xf32>
    %77 = arith.addf %58, %76 : vector<1x512xf32>
    %c4_i32 = arith.constant 4 : i32
    %c0_20 = arith.constant 0 : index
    %78 = memref.load %arg5[%c0_20] : memref<1xf32, #tpu.memory_space<smem>>
    %79 = vector.broadcast %78 : f32 to vector<1x512xf32>
    %80 = arith.addf %77, %79 : vector<1x512xf32>
    %c0_21 = arith.constant 0 : index
    %c0_22 = arith.constant 0 : index
    %81 = vector.load %arg6[%c0_21, %c0_22] : memref<1x512xf32, #tpu.memory_space<vmem>>, vector<1x512xf32>
    tpu.vector_store %arg6[%c0_21, %c0_22], %80 {strides = array<i32>} : memref<1x512xf32, #tpu.memory_space<vmem>>, vector<1x512xf32>,
    return
  }
  func.func @transform_0(%arg0: i32) -> (i32, i32) {
    %c0_i32 = arith.constant 0 : i32
    %c0_i32_0 = arith.constant 0 : i32
    return %c0_i32, %arg0 : i32, i32
  }
  func.func @transform_1(%arg0: i32) -> (i32, i32) {
    %c0_i32 = arith.constant 0 : i32
    %c0_i32_0 = arith.constant 0 : i32
    %c0_i32_1 = arith.constant 0 : i32
    return %c0_i32, %c0_i32_0 : i32, i32
  }
  func.func @transform_2(%arg0: i32) -> (i32, i32) {
    %c0_i32 = arith.constant 0 : i32
    %c0_i32_0 = arith.constant 0 : i32
    %c0_i32_1 = arith.constant 0 : i32
    return %c0_i32, %c0_i32_0 : i32, i32
  }
  func.func @transform_3(%arg0: i32) -> (i32, i32) {
    %c0_i32 = arith.constant 0 : i32
    %c0_i32_0 = arith.constant 0 : i32
    %c0_i32_1 = arith.constant 0 : i32
    return %c0_i32, %c0_i32_0 : i32, i32
  }
  func.func @transform_4(%arg0: i32) -> i32 {
    %c0_i32 = arith.constant 0 : i32
    %c0_i32_0 = arith.constant 0 : i32
    return %c0_i32 : i32
  }
  func.func @transform_5(%arg0: i32) -> (i32, i32) {
    %c0_i32 = arith.constant 0 : i32
    %c0_i32_0 = arith.constant 0 : i32
    return %c0_i32, %arg0 : i32, i32
  }
}

</mosaic_0001>

<llo_original>
// kernel: tpu_custom_call.1
$region0: #{tpu_custom_call.1}
  #allocation0 [shape = 'u32[]', space=smem, size = 0x4, offset = 0x4, fixed_abs, tag = 'smem constant byte address 0x4 - core index']
  #allocation1 [shape = 'u32[144,128]{1,0:T(1,128)}', space=vmem, size = 0x12000, scoped, tag = 'internal scratch']
  #allocation2 [shape = 'f32[1]{0:T(128)S(6)}', space=smem, size = 0x200, scoped, tag = 'scoped memory for tpu_custom_call.1']
  %s0 = inlined_call_operand.vmem [shape: f32[1,1024], index: 0, kind: input, shape index: {}]
  %s1 = inlined_call_operand.vmem [shape: f32[512,1], index: 1, kind: input, shape index: {}]
  %s2 = inlined_call_operand.vmem [shape: f32[512,1], index: 2, kind: input, shape index: {}]
  %s3 = inlined_call_operand.vmem [shape: f32[512,1], index: 3, kind: input, shape index: {}]
  %s4 = inlined_call_operand.<no memory space> [shape: f32[1], index: 4, kind: input, shape index: {}]
  %s5 = inlined_call_operand.hbm [shape: f32[1,1024], index: 5, kind: output, shape index: {}]
  %s6 = sld [smem:[#allocation0]]
  $region53: #{tpu_custom_call.1} parent=0
    _
  %s8 = ssub.s32 1, %s6
  %s9 = scalar_select 0, %s8, %s6
  %10 = sst [smem:[#allocation2]] %s4
  $region1: #{tpu_custom_call.1} parent=0
    #allocation3 [shape = 'u8[4096]{0}', space=vmem, size = 0x1000, scoped, tag = 'output window, operand 0']
    #allocation4 [shape = 's32[2]{0}', space=sflag, size = 0x8, scoped, tag = 'scoped memory for tpu_custom_call.1']
    %11 = vsyncpa [#allocation4], 0
    %s12 = scalar_lea.sflag [#allocation4], 1
    %13 = vsyncpa %s12, 0
    loop: start=0, step=1, limit=4
    $region2: #{tpu_custom_call.1} parent=1 // loop_pre_header
      _
    $region3: #{tpu_custom_call.1} parent=1 // loop_header
      %s15 = sphi 0, %s19
      %p16 = scmp.ge.s32.totalorder %s15, 4
      %s25 = sphi 0, %s27
      %s28 = sphi 0, %s25
      %s29 = sphi 0, %s28
      %s45 = sphi 0, %s29
      %s49 = sphi 0, %s49
      %s51 = sphi 0, %s49
      %s52 = sphi 0, %s51
      %s66 = sphi 0, %s52
      %s70 = sphi 0, %s70
      %s72 = sphi 0, %s70
      %s73 = sphi 0, %s72
      %s87 = sphi 0, %s73
      %s91 = sphi 0, %s91
      %s93 = sphi 0, %s91
      %s94 = sphi 0, %s93
      %s108 = sphi 0, %s94
      %s112 = sphi 0, %s112
      %s114 = sphi 0, %s112
      %s115 = sphi 0, %s114
      %s129 = sphi 0, %s115
      %s135 = sphi 0, %s137
      %s138 = sphi 0, %s135
      %s139 = sphi 0, %s138
      %s155 = sphi 0, %s139
    $region4: #{tpu_custom_call.1} parent=1 // loop_header_branch
      %18 = sbr.rel (%p16) target = $region8
    $region5: #{tpu_custom_call.1} parent=1 // loop_body
      %s20 = ssub.s32 %s15, 1
      %s21 = ssub.s32 %s15, 2
      %s22 = sadd.s32 %s15, 1
      %s23 = ssub.s32 %s15, %s22
      %p24 = scmp.eq.s32.totalorder %s23, 0
      %s26 = sadd.s32 %s25, 1
      %s27 = scalar_select %p24, %s25, %s26
      %p30 = pneg %p24
      %p31 = scmp.eq.s32.totalorder %s15, 1
      %p32 = por %p30, %p31
      %p33 = scmp.ne.s32.totalorder %s25, %s28
      %p34 = scmp.eq.s32.totalorder %s15, 0
      %p35 = por %p33, %p34
      %p36 = scmp.ne.s32.totalorder %s25, %s28
      %p37 = scmp.eq.s32.totalorder %s20, 1
      %p38 = por %p36, %p37
      %p39 = scmp.ne.s32.totalorder %s28, %s29
      %p40 = scmp.eq.s32.totalorder %s20, 0
      %p41 = por %p39, %p40
      %p42 = scmp.ne.s32.totalorder %s28, %s29
      %p43 = scmp.eq.s32.totalorder %s21, 1
      %p44 = por %p42, %p43
      %p46 = scmp.ne.s32.totalorder %s29, %s45
      %p47 = scmp.eq.s32.totalorder %s21, 0
      %p48 = por %p46, %p47
      %s50 = sadd.s32 %s49, 1
      %p53 = scmp.eq.s32.totalorder %s15, 1
      %p54 = scmp.ne.s32.totalorder %s49, %s51
      %p55 = scmp.eq.s32.totalorder %s15, 0
      %p56 = por %p54, %p55
      %p57 = scmp.ne.s32.totalorder %s49, %s51
      %p58 = scmp.eq.s32.totalorder %s20, 1
      %p59 = por %p57, %p58
      %p60 = scmp.ne.s32.totalorder %s51, %s52
      %p61 = scmp.eq.s32.totalorder %s20, 0
      %p62 = por %p60, %p61
      %p63 = scmp.ne.s32.totalorder %s51, %s52
      %p64 = scmp.eq.s32.totalorder %s21, 1
      %p65 = por %p63, %p64
      %p67 = scmp.ne.s32.totalorder %s52, %s66
      %p68 = scmp.eq.s32.totalorder %s21, 0
      %p69 = por %p67, %p68
      %s71 = sadd.s32 %s70, 1
      %p74 = scmp.eq.s32.totalorder %s15, 1
      %p75 = scmp.ne.s32.totalorder %s70, %s72
      %p76 = scmp.eq.s32.totalorder %s15, 0
      %p77 = por %p75, %p76
      %p78 = scmp.ne.s32.totalorder %s70, %s72
      %p79 = scmp.eq.s32.totalorder %s20, 1
      %p80 = por %p78, %p79
      %p81 = scmp.ne.s32.totalorder %s72, %s73
      %p82 = scmp.eq.s32.totalorder %s20, 0
      %p83 = por %p81, %p82
      %p84 = scmp.ne.s32.totalorder %s72, %s73
      %p85 = scmp.eq.s32.totalorder %s21, 1
      %p86 = por %p84, %p85
      %p88 = scmp.ne.s32.totalorder %s73, %s87
      %p89 = scmp.eq.s32.totalorder %s21, 0
      %p90 = por %p88, %p89
      %s92 = sadd.s32 %s91, 1
      %p95 = scmp.eq.s32.totalorder %s15, 1
      %p96 = scmp.ne.s32.totalorder %s91, %s93
      %p97 = scmp.eq.s32.totalorder %s15, 0
      %p98 = por %p96, %p97
      %p99 = scmp.ne.s32.totalorder %s91, %s93
      %p100 = scmp.eq.s32.totalorder %s20, 1
      %p101 = por %p99, %p100
      %p102 = scmp.ne.s32.totalorder %s93, %s94
      %p103 = scmp.eq.s32.totalorder %s20, 0
      %p104 = por %p102, %p103
      %p105 = scmp.ne.s32.totalorder %s93, %s94
      %p106 = scmp.eq.s32.totalorder %s21, 1
      %p107 = por %p105, %p106
      %p109 = scmp.ne.s32.totalorder %s94, %s108
      %p110 = scmp.eq.s32.totalorder %s21, 0
      %p111 = por %p109, %p110
      %s113 = sadd.s32 %s112, 1
      %p116 = scmp.eq.s32.totalorder %s15, 1
      %p117 = scmp.ne.s32.totalorder %s112, %s114
      %p118 = scmp.eq.s32.totalorder %s15, 0
      %p119 = por %p117, %p118
      %p120 = scmp.ne.s32.totalorder %s112, %s114
      %p121 = scmp.eq.s32.totalorder %s20, 1
      %p122 = por %p120, %p121
      %p123 = scmp.ne.s32.totalorder %s114, %s115
      %p124 = scmp.eq.s32.totalorder %s20, 0
      %p125 = por %p123, %p124
      %p126 = scmp.ne.s32.totalorder %s114, %s115
      %p127 = scmp.eq.s32.totalorder %s21, 1
      %p128 = por %p126, %p127
      %p130 = scmp.ne.s32.totalorder %s115, %s129
      %p131 = scmp.eq.s32.totalorder %s21, 0
      %p132 = por %p130, %p131
      %s133 = ssub.s32 %s15, %s22
      %p134 = scmp.eq.s32.totalorder %s133, 0
      %s136 = sadd.s32 %s135, 1
      %s137 = scalar_select %p134, %s135, %s136
      %p140 = pneg %p134
      %p141 = scmp.eq.s32.totalorder %s15, 1
      %p142 = por %p140, %p141
      %p143 = scmp.ne.s32.totalorder %s135, %s138
      %p144 = scmp.eq.s32.totalorder %s15, 0
      %p145 = por %p143, %p144
      %p146 = scmp.ne.s32.totalorder %s135, %s138
      %p147 = scmp.eq.s32.totalorder %s20, 1
      %p148 = por %p146, %p147
      %p149 = scmp.ne.s32.totalorder %s138, %s139
      %p150 = scmp.eq.s32.totalorder %s20, 0
      %p151 = por %p149, %p150
      %p152 = scmp.ne.s32.totalorder %s138, %s139
      %p153 = scmp.eq.s32.totalorder %s21, 1
      %p154 = por %p152, %p153
      %p156 = scmp.ne.s32.totalorder %s139, %s155
      %p157 = scmp.eq.s32.totalorder %s21, 0
      %p158 = por %p156, %p157
      %p159 = scmp.le.s32.totalorder 1, %s15
      %p160 = scmp.lt.s32.totalorder %s15, 3
      %p161 = pnand %p159, %p160
      %p162 = pneg %p161
      // Predicated region
      $region9: #{tpu_custom_call.1} parent=5 // pred_check
        _
      $region10: #{tpu_custom_call.1} parent=5 // pred_check_branch
        %164 = sbr.rel (%p161) target = $region12
      $region11: #{tpu_custom_call.1} parent=5 // pred_region
        %s165 = ssub.s32 %s15, 1
        // Predicated region
        $region13: #{tpu_custom_call.1} parent=11 // pred_check
          %p166 = pneg %p62
        $region14: #{tpu_custom_call.1} parent=11 // pred_check_branch
          %168 = sbr.rel (%p166) target = $region16
        $region15: #{tpu_custom_call.1} parent=11 // pred_region
          _
        $region16: #{tpu_custom_call.1} parent=11 // pred_fallthru
          _
        // Predicated region
        $region17: #{tpu_custom_call.1} parent=11 // pred_check
          %p169 = pneg %p83
        $region18: #{tpu_custom_call.1} parent=11 // pred_check_branch
          %171 = sbr.rel (%p169) target = $region20
        $region19: #{tpu_custom_call.1} parent=11 // pred_region
          _
        $region20: #{tpu_custom_call.1} parent=11 // pred_fallthru
          _
        // Predicated region
        $region21: #{tpu_custom_call.1} parent=11 // pred_check
          %p172 = pneg %p104
        $region22: #{tpu_custom_call.1} parent=11 // pred_check_branch
          %174 = sbr.rel (%p172) target = $region24
        $region23: #{tpu_custom_call.1} parent=11 // pred_region
          _
        $region24: #{tpu_custom_call.1} parent=11 // pred_fallthru
          _
        // Predicated region
        $region25: #{tpu_custom_call.1} parent=11 // pred_check
          %p175 = pneg %p125
        $region26: #{tpu_custom_call.1} parent=11 // pred_check_branch
          %177 = sbr.rel (%p175) target = $region28
        $region27: #{tpu_custom_call.1} parent=11 // pred_region
          _
        $region28: #{tpu_custom_call.1} parent=11 // pred_fallthru
          _
      $region12: #{tpu_custom_call.1} parent=5 // pred_fallthru
        _
      %p178 = scmp.lt.s32.totalorder %s15, 2
      // Predicated region
      $region29: #{tpu_custom_call.1} parent=5 // pred_check
        %p179 = pneg %p178
      $region30: #{tpu_custom_call.1} parent=5 // pred_check_branch
        %181 = sbr.rel (%p179) target = $region32
      $region31: #{tpu_custom_call.1} parent=5 // pred_region
        // Predicated region
        $region33: #{tpu_custom_call.1} parent=31 // pred_check
          %p182 = pneg %p35
        $region34: #{tpu_custom_call.1} parent=31 // pred_check_branch
          %184 = sbr.rel (%p182) target = $region36
        $region35: #{tpu_custom_call.1} parent=31 // pred_region
          %s185 = smul.u32 4, %s15
          %p186 = scmp.lt.s32.totalorder %s185, 7
          %s187 = scalar_select %p186, %s185, 7
          %s188 = scalar_lea.vmem %s0, %s187
          %s189 = smul.u32 4, %s15
        $region36: #{tpu_custom_call.1} parent=31 // pred_fallthru
          _
      $region32: #{tpu_custom_call.1} parent=5 // pred_fallthru
        _
      %p190 = scmp.le.s32.totalorder 1, %s15
      %p191 = scmp.lt.s32.totalorder %s15, 3
      %p192 = pnand %p190, %p191
      %p193 = pneg %p192
      // Predicated region
      $region37: #{tpu_custom_call.1} parent=5 // pred_check
        _
      $region38: #{tpu_custom_call.1} parent=5 // pred_check_branch
        %195 = sbr.rel (%p192) target = $region40
      $region39: #{tpu_custom_call.1} parent=5 // pred_region
        %s196 = ssub.s32 %s15, 1
        %s197 = smul.u32 4, %s20
        %p198 = scmp.lt.s32.totalorder %s197, 7
        %s199 = scalar_select %p198, %s197, 7
        %s200 = scalar_lea.vmem %s0, %s199
        %p201 = pneg %p41
        %p202 = pneg %p38
        %p203 = pneg %p62
        %p204 = pneg %p59
        %p205 = pneg %p83
        %p206 = pneg %p80
        %p207 = pneg %p104
        %p208 = pneg %p101
        %p209 = pneg %p125
        %p210 = pneg %p122
        %p211 = pneg %p151
        %p212 = pneg %p148
        %s213 = sand.u32 %s138, 1
        %s214 = scalar_lea.sflag [#allocation4], %s213
        %s215 = sand.u32 %s138, 1
        %s216 = smul.addr %s215, 4
        %s217 = scalar_lea.vmem [#allocation3], %s216
        %s218 = smul.u32 4, %s20
        %p219 = scmp.lt.s32.totalorder %s218, 7
        %s220 = scalar_select %p219, %s218, 7
        %s221 = scalar_lea.vmem %s0, %s220
        %s222 = smul.u32 4, %s20
        %s223 = smul.u32 4, %s20
        %v224 = vld [vmem:[%s221] sm:$0xf]
        %v225 = vld [vmem:[%s1] sm:$0xff]
        %v226 = vld [vmem:[%s1 + $0x8] sm:$0xff]
        %v227 = vld [vmem:[%s1 + $0x10] sm:$0xff]
        %v228 = vld [vmem:[%s1 + $0x18] sm:$0xff]
        %v229 = vld [vmem:[%s1 + $0x20] sm:$0xff]
        %v230 = vld [vmem:[%s1 + $0x28] sm:$0xff]
        %v231 = vld [vmem:[%s1 + $0x30] sm:$0xff]
        %v232 = vld [vmem:[%s1 + $0x38] sm:$0xff]
        %v233 = vld [vmem:[%s1 + $0x40] sm:$0xff]
        %v234 = vld [vmem:[%s1 + $0x48] sm:$0xff]
        %v235 = vld [vmem:[%s1 + $0x50] sm:$0xff]
        %v236 = vld [vmem:[%s1 + $0x58] sm:$0xff]
        %v237 = vld [vmem:[%s1 + $0x60] sm:$0xff]
        %v238 = vld [vmem:[%s1 + $0x68] sm:$0xff]
        %v239 = vld [vmem:[%s1 + $0x70] sm:$0xff]
        %v240 = vld [vmem:[%s1 + $0x78] sm:$0xff]
        %v241 = vld [vmem:[%s2] sm:$0xff]
        %v242 = vld [vmem:[%s2 + $0x8] sm:$0xff]
        %v243 = vld [vmem:[%s2 + $0x10] sm:$0xff]
        %v244 = vld [vmem:[%s2 + $0x18] sm:$0xff]
        %v245 = vld [vmem:[%s2 + $0x20] sm:$0xff]
        %v246 = vld [vmem:[%s2 + $0x28] sm:$0xff]
        %v247 = vld [vmem:[%s2 + $0x30] sm:$0xff]
        %v248 = vld [vmem:[%s2 + $0x38] sm:$0xff]
        %v249 = vld [vmem:[%s2 + $0x40] sm:$0xff]
        %v250 = vld [vmem:[%s2 + $0x48] sm:$0xff]
        %v251 = vld [vmem:[%s2 + $0x50] sm:$0xff]
        %v252 = vld [vmem:[%s2 + $0x58] sm:$0xff]
        %v253 = vld [vmem:[%s2 + $0x60] sm:$0xff]
        %v254 = vld [vmem:[%s2 + $0x68] sm:$0xff]
        %v255 = vld [vmem:[%s2 + $0x70] sm:$0xff]
        %v256 = vld [vmem:[%s2 + $0x78] sm:$0xff]
        %258 = vset.pattern.permute.xlu0 0
        %259 = vperm.xlu0 %258, %v225
        %v260 = vpop.permute.xlu0 %259
        %263 = vset.pattern.permute.xlu0 0
        %264 = vperm.xlu0 %263, %v226
        %v265 = vpop.permute.xlu0 %264
        %268 = vset.pattern.permute.xlu0 0
        %269 = vperm.xlu0 %268, %v227
        %v270 = vpop.permute.xlu0 %269
        %273 = vset.pattern.permute.xlu0 0
        %274 = vperm.xlu0 %273, %v228
        %v275 = vpop.permute.xlu0 %274
        %278 = vset.pattern.permute.xlu0 0
        %279 = vperm.xlu0 %278, %v229
        %v280 = vpop.permute.xlu0 %279
        %283 = vset.pattern.permute.xlu0 0
        %284 = vperm.xlu0 %283, %v230
        %v285 = vpop.permute.xlu0 %284
        %288 = vset.pattern.permute.xlu0 0
        %289 = vperm.xlu0 %288, %v231
        %v290 = vpop.permute.xlu0 %289
        %293 = vset.pattern.permute.xlu0 0
        %294 = vperm.xlu0 %293, %v232
        %v295 = vpop.permute.xlu0 %294
        %298 = vset.pattern.permute.xlu0 0
        %299 = vperm.xlu0 %298, %v233
        %v300 = vpop.permute.xlu0 %299
        %303 = vset.pattern.permute.xlu0 0
        %304 = vperm.xlu0 %303, %v234
        %v305 = vpop.permute.xlu0 %304
        %308 = vset.pattern.permute.xlu0 0
        %309 = vperm.xlu0 %308, %v235
        %v310 = vpop.permute.xlu0 %309
        %313 = vset.pattern.permute.xlu0 0
        %314 = vperm.xlu0 %313, %v236
        %v315 = vpop.permute.xlu0 %314
        %318 = vset.pattern.permute.xlu0 0
        %319 = vperm.xlu0 %318, %v237
        %v320 = vpop.permute.xlu0 %319
        %323 = vset.pattern.permute.xlu0 0
        %324 = vperm.xlu0 %323, %v238
        %v325 = vpop.permute.xlu0 %324
        %328 = vset.pattern.permute.xlu0 0
        %329 = vperm.xlu0 %328, %v239
        %v330 = vpop.permute.xlu0 %329
        %333 = vset.pattern.permute.xlu0 0
        %334 = vperm.xlu0 %333, %v240
        %v335 = vpop.permute.xlu0 %334
        %v338 = vlaneseq
        %v339 = vshrl.u32 %v338, 7
        %v340 = vsub.s32 0, %v339
        %v341 = vrot.slane %v224, %v340
        %v342 = vlaneseq
        %v343 = vshrl.u32 %v342, 7
        %v344 = vsub.s32 1, %v343
        %v345 = vrot.slane %v224, %v344
        %v346 = vlaneseq
        %v347 = vshrl.u32 %v346, 7
        %v348 = vsub.s32 2, %v347
        %v349 = vrot.slane %v224, %v348
        %v350 = vlaneseq
        %v351 = vshrl.u32 %v350, 7
        %v352 = vsub.s32 3, %v351
        %v353 = vrot.slane %v224, %v352
        %v358 = vmul.f32 %v260, %v341
        %v359 = vmul.f32 %v260, %v345
        %v360 = vmul.f32 %v260, %v349
        %v361 = vmul.f32 %v260, %v353
        %v362 = vmul.f32 %v265, %v341
        %v363 = vmul.f32 %v265, %v345
        %v364 = vmul.f32 %v265, %v349
        %v365 = vmul.f32 %v265, %v353
        %v366 = vmul.f32 %v270, %v341
        %v367 = vmul.f32 %v270, %v345
        %v368 = vmul.f32 %v270, %v349
        %v369 = vmul.f32 %v270, %v353
        %v370 = vmul.f32 %v275, %v341
        %v371 = vmul.f32 %v275, %v345
        %v372 = vmul.f32 %v275, %v349
        %v373 = vmul.f32 %v275, %v353
        %v374 = vmul.f32 %v280, %v341
        %v375 = vmul.f32 %v280, %v345
        %v376 = vmul.f32 %v280, %v349
        %v377 = vmul.f32 %v280, %v353
        %v378 = vmul.f32 %v285, %v341
        %v379 = vmul.f32 %v285, %v345
        %v380 = vmul.f32 %v285, %v349
        %v381 = vmul.f32 %v285, %v353
        %v382 = vmul.f32 %v290, %v341
        %v383 = vmul.f32 %v290, %v345
        %v384 = vmul.f32 %v290, %v349
        %v385 = vmul.f32 %v290, %v353
        %v386 = vmul.f32 %v295, %v341
        %v387 = vmul.f32 %v295, %v345
        %v388 = vmul.f32 %v295, %v349
        %v389 = vmul.f32 %v295, %v353
        %v390 = vmul.f32 %v300, %v341
        %v391 = vmul.f32 %v300, %v345
        %v392 = vmul.f32 %v300, %v349
        %v393 = vmul.f32 %v300, %v353
        %v394 = vmul.f32 %v305, %v341
        %v395 = vmul.f32 %v305, %v345
        %v396 = vmul.f32 %v305, %v349
        %v397 = vmul.f32 %v305, %v353
        %v398 = vmul.f32 %v310, %v341
        %v399 = vmul.f32 %v310, %v345
        %v400 = vmul.f32 %v310, %v349
        %v401 = vmul.f32 %v310, %v353
        %v402 = vmul.f32 %v315, %v341
        %v403 = vmul.f32 %v315, %v345
        %v404 = vmul.f32 %v315, %v349
        %v405 = vmul.f32 %v315, %v353
        %v406 = vmul.f32 %v320, %v341
        %v407 = vmul.f32 %v320, %v345
        %v408 = vmul.f32 %v320, %v349
        %v409 = vmul.f32 %v320, %v353
        %v410 = vmul.f32 %v325, %v341
        %v411 = vmul.f32 %v325, %v345
        %v412 = vmul.f32 %v325, %v349
        %v413 = vmul.f32 %v325, %v353
        %v414 = vmul.f32 %v330, %v341
        %v415 = vmul.f32 %v330, %v345
        %v416 = vmul.f32 %v330, %v349
        %v417 = vmul.f32 %v330, %v353
        %v418 = vmul.f32 %v335, %v341
        %v419 = vmul.f32 %v335, %v345
        %v420 = vmul.f32 %v335, %v349
        %v421 = vmul.f32 %v335, %v353
        %423 = vset.pattern.permute.xlu0 0
        %424 = vperm.xlu0 %423, %v241
        %v425 = vpop.permute.xlu0 %424
        %428 = vset.pattern.permute.xlu0 0
        %429 = vperm.xlu0 %428, %v242
        %v430 = vpop.permute.xlu0 %429
        %433 = vset.pattern.permute.xlu0 0
        %434 = vperm.xlu0 %433, %v243
        %v435 = vpop.permute.xlu0 %434
        %438 = vset.pattern.permute.xlu0 0
        %439 = vperm.xlu0 %438, %v244
        %v440 = vpop.permute.xlu0 %439
        %443 = vset.pattern.permute.xlu0 0
        %444 = vperm.xlu0 %443, %v245
        %v445 = vpop.permute.xlu0 %444
        %448 = vset.pattern.permute.xlu0 0
        %449 = vperm.xlu0 %448, %v246
        %v450 = vpop.permute.xlu0 %449
        %453 = vset.pattern.permute.xlu0 0
        %454 = vperm.xlu0 %453, %v247
        %v455 = vpop.permute.xlu0 %454
        %458 = vset.pattern.permute.xlu0 0
        %459 = vperm.xlu0 %458, %v248
        %v460 = vpop.permute.xlu0 %459
        %463 = vset.pattern.permute.xlu0 0
        %464 = vperm.xlu0 %463, %v249
        %v465 = vpop.permute.xlu0 %464
        %468 = vset.pattern.permute.xlu0 0
        %469 = vperm.xlu0 %468, %v250
        %v470 = vpop.permute.xlu0 %469
        %473 = vset.pattern.permute.xlu0 0
        %474 = vperm.xlu0 %473, %v251
        %v475 = vpop.permute.xlu0 %474
        %478 = vset.pattern.permute.xlu0 0
        %479 = vperm.xlu0 %478, %v252
        %v480 = vpop.permute.xlu0 %479
        %483 = vset.pattern.permute.xlu0 0
        %484 = vperm.xlu0 %483, %v253
        %v485 = vpop.permute.xlu0 %484
        %488 = vset.pattern.permute.xlu0 0
        %489 = vperm.xlu0 %488, %v254
        %v490 = vpop.permute.xlu0 %489
        %493 = vset.pattern.permute.xlu0 0
        %494 = vperm.xlu0 %493, %v255
        %v495 = vpop.permute.xlu0 %494
        %498 = vset.pattern.permute.xlu0 0
        %499 = vperm.xlu0 %498, %v256
        %v500 = vpop.permute.xlu0 %499
        %v502 = vadd.f32 %v358, %v425
        %v503 = vadd.f32 %v359, %v425
        %v504 = vadd.f32 %v360, %v425
        %v505 = vadd.f32 %v361, %v425
        %v506 = vadd.f32 %v362, %v430
        %v507 = vadd.f32 %v363, %v430
        %v508 = vadd.f32 %v364, %v430
        %v509 = vadd.f32 %v365, %v430
        %v510 = vadd.f32 %v366, %v435
        %v511 = vadd.f32 %v367, %v435
        %v512 = vadd.f32 %v368, %v435
        %v513 = vadd.f32 %v369, %v435
        %v514 = vadd.f32 %v370, %v440
        %v515 = vadd.f32 %v371, %v440
        %v516 = vadd.f32 %v372, %v440
        %v517 = vadd.f32 %v373, %v440
        %v518 = vadd.f32 %v374, %v445
        %v519 = vadd.f32 %v375, %v445
        %v520 = vadd.f32 %v376, %v445
        %v521 = vadd.f32 %v377, %v445
        %v522 = vadd.f32 %v378, %v450
        %v523 = vadd.f32 %v379, %v450
        %v524 = vadd.f32 %v380, %v450
        %v525 = vadd.f32 %v381, %v450
        %v526 = vadd.f32 %v382, %v455
        %v527 = vadd.f32 %v383, %v455
        %v528 = vadd.f32 %v384, %v455
        %v529 = vadd.f32 %v385, %v455
        %v530 = vadd.f32 %v386, %v460
        %v531 = vadd.f32 %v387, %v460
        %v532 = vadd.f32 %v388, %v460
        %v533 = vadd.f32 %v389, %v460
        %v534 = vadd.f32 %v390, %v465
        %v535 = vadd.f32 %v391, %v465
        %v536 = vadd.f32 %v392, %v465
        %v537 = vadd.f32 %v393, %v465
        %v538 = vadd.f32 %v394, %v470
        %v539 = vadd.f32 %v395, %v470
        %v540 = vadd.f32 %v396, %v470
        %v541 = vadd.f32 %v397, %v470
        %v542 = vadd.f32 %v398, %v475
        %v543 = vadd.f32 %v399, %v475
        %v544 = vadd.f32 %v400, %v475
        %v545 = vadd.f32 %v401, %v475
        %v546 = vadd.f32 %v402, %v480
        %v547 = vadd.f32 %v403, %v480
        %v548 = vadd.f32 %v404, %v480
        %v549 = vadd.f32 %v405, %v480
        %v550 = vadd.f32 %v406, %v485
        %v551 = vadd.f32 %v407, %v485
        %v552 = vadd.f32 %v408, %v485
        %v553 = vadd.f32 %v409, %v485
        %v554 = vadd.f32 %v410, %v490
        %v555 = vadd.f32 %v411, %v490
        %v556 = vadd.f32 %v412, %v490
        %v557 = vadd.f32 %v413, %v490
        %v558 = vadd.f32 %v414, %v495
        %v559 = vadd.f32 %v415, %v495
        %v560 = vadd.f32 %v416, %v495
        %v561 = vadd.f32 %v417, %v495
        %v562 = vadd.f32 %v418, %v500
        %v563 = vadd.f32 %v419, %v500
        %v564 = vadd.f32 %v420, %v500
        %v565 = vadd.f32 %v421, %v500
        %v566 = vtanh.pop %v502
        %v567 = vtanh.pop %v503
        %v568 = vtanh.pop %v504
        %v569 = vtanh.pop %v505
        %v570 = vtanh.pop %v506
        %v571 = vtanh.pop %v507
        %v572 = vtanh.pop %v508
        %v573 = vtanh.pop %v509
        %v574 = vtanh.pop %v510
        %v575 = vtanh.pop %v511
        %v576 = vtanh.pop %v512
        %v577 = vtanh.pop %v513
        %v578 = vtanh.pop %v514
        %v579 = vtanh.pop %v515
        %v580 = vtanh.pop %v516
        %v581 = vtanh.pop %v517
        %v582 = vtanh.pop %v518
        %v583 = vtanh.pop %v519
        %v584 = vtanh.pop %v520
        %v585 = vtanh.pop %v521
        %v586 = vtanh.pop %v522
        %v587 = vtanh.pop %v523
        %v588 = vtanh.pop %v524
        %v589 = vtanh.pop %v525
        %v590 = vtanh.pop %v526
        %v591 = vtanh.pop %v527
        %v592 = vtanh.pop %v528
        %v593 = vtanh.pop %v529
        %v594 = vtanh.pop %v530
        %v595 = vtanh.pop %v531
        %v596 = vtanh.pop %v532
        %v597 = vtanh.pop %v533
        %v598 = vtanh.pop %v534
        %v599 = vtanh.pop %v535
        %v600 = vtanh.pop %v536
        %v601 = vtanh.pop %v537
        %v602 = vtanh.pop %v538
        %v603 = vtanh.pop %v539
        %v604 = vtanh.pop %v540
        %v605 = vtanh.pop %v541
        %v606 = vtanh.pop %v542
        %v607 = vtanh.pop %v543
        %v608 = vtanh.pop %v544
        %v609 = vtanh.pop %v545
        %v610 = vtanh.pop %v546
        %v611 = vtanh.pop %v547
        %v612 = vtanh.pop %v548
        %v613 = vtanh.pop %v549
        %v614 = vtanh.pop %v550
        %v615 = vtanh.pop %v551
        %v616 = vtanh.pop %v552
        %v617 = vtanh.pop %v553
        %v618 = vtanh.pop %v554
        %v619 = vtanh.pop %v555
        %v620 = vtanh.pop %v556
        %v621 = vtanh.pop %v557
        %v622 = vtanh.pop %v558
        %v623 = vtanh.pop %v559
        %v624 = vtanh.pop %v560
        %v625 = vtanh.pop %v561
        %v626 = vtanh.pop %v562
        %v627 = vtanh.pop %v563
        %v628 = vtanh.pop %v564
        %v629 = vtanh.pop %v565
        %v630 = vld [vmem:[%s3] sm:$0xff]
        %v631 = vld [vmem:[%s3 + $0x8] sm:$0xff]
        %v632 = vld [vmem:[%s3 + $0x10] sm:$0xff]
        %v633 = vld [vmem:[%s3 + $0x18] sm:$0xff]
        %v634 = vld [vmem:[%s3 + $0x20] sm:$0xff]
        %v635 = vld [vmem:[%s3 + $0x28] sm:$0xff]
        %v636 = vld [vmem:[%s3 + $0x30] sm:$0xff]
        %v637 = vld [vmem:[%s3 + $0x38] sm:$0xff]
        %v638 = vld [vmem:[%s3 + $0x40] sm:$0xff]
        %v639 = vld [vmem:[%s3 + $0x48] sm:$0xff]
        %v640 = vld [vmem:[%s3 + $0x50] sm:$0xff]
        %v641 = vld [vmem:[%s3 + $0x58] sm:$0xff]
        %v642 = vld [vmem:[%s3 + $0x60] sm:$0xff]
        %v643 = vld [vmem:[%s3 + $0x68] sm:$0xff]
        %v644 = vld [vmem:[%s3 + $0x70] sm:$0xff]
        %v645 = vld [vmem:[%s3 + $0x78] sm:$0xff]
        %647 = vset.pattern.permute.xlu0 0
        %648 = vperm.xlu0 %647, %v630
        %v649 = vpop.permute.xlu0 %648
        %652 = vset.pattern.permute.xlu0 0
        %653 = vperm.xlu0 %652, %v631
        %v654 = vpop.permute.xlu0 %653
        %657 = vset.pattern.permute.xlu0 0
        %658 = vperm.xlu0 %657, %v632
        %v659 = vpop.permute.xlu0 %658
        %662 = vset.pattern.permute.xlu0 0
        %663 = vperm.xlu0 %662, %v633
        %v664 = vpop.permute.xlu0 %663
        %667 = vset.pattern.permute.xlu0 0
        %668 = vperm.xlu0 %667, %v634
        %v669 = vpop.permute.xlu0 %668
        %672 = vset.pattern.permute.xlu0 0
        %673 = vperm.xlu0 %672, %v635
        %v674 = vpop.permute.xlu0 %673
        %677 = vset.pattern.permute.xlu0 0
        %678 = vperm.xlu0 %677, %v636
        %v679 = vpop.permute.xlu0 %678
        %682 = vset.pattern.permute.xlu0 0
        %683 = vperm.xlu0 %682, %v637
        %v684 = vpop.permute.xlu0 %683
        %687 = vset.pattern.permute.xlu0 0
        %688 = vperm.xlu0 %687, %v638
        %v689 = vpop.permute.xlu0 %688
        %692 = vset.pattern.permute.xlu0 0
        %693 = vperm.xlu0 %692, %v639
        %v694 = vpop.permute.xlu0 %693
        %697 = vset.pattern.permute.xlu0 0
        %698 = vperm.xlu0 %697, %v640
        %v699 = vpop.permute.xlu0 %698
        %702 = vset.pattern.permute.xlu0 0
        %703 = vperm.xlu0 %702, %v641
        %v704 = vpop.permute.xlu0 %703
        %707 = vset.pattern.permute.xlu0 0
        %708 = vperm.xlu0 %707, %v642
        %v709 = vpop.permute.xlu0 %708
        %712 = vset.pattern.permute.xlu0 0
        %713 = vperm.xlu0 %712, %v643
        %v714 = vpop.permute.xlu0 %713
        %717 = vset.pattern.permute.xlu0 0
        %718 = vperm.xlu0 %717, %v644
        %v719 = vpop.permute.xlu0 %718
        %722 = vset.pattern.permute.xlu0 0
        %723 = vperm.xlu0 %722, %v645
        %v724 = vpop.permute.xlu0 %723
        %v726 = vmul.f32 %v566, %v649
        %v727 = vmul.f32 %v567, %v649
        %v728 = vmul.f32 %v568, %v649
        %v729 = vmul.f32 %v569, %v649
        %v730 = vmul.f32 %v570, %v654
        %v731 = vmul.f32 %v571, %v654
        %v732 = vmul.f32 %v572, %v654
        %v733 = vmul.f32 %v573, %v654
        %v734 = vmul.f32 %v574, %v659
        %v735 = vmul.f32 %v575, %v659
        %v736 = vmul.f32 %v576, %v659
        %v737 = vmul.f32 %v577, %v659
        %v738 = vmul.f32 %v578, %v664
        %v739 = vmul.f32 %v579, %v664
        %v740 = vmul.f32 %v580, %v664
        %v741 = vmul.f32 %v581, %v664
        %v742 = vmul.f32 %v582, %v669
        %v743 = vmul.f32 %v583, %v669
        %v744 = vmul.f32 %v584, %v669
        %v745 = vmul.f32 %v585, %v669
        %v746 = vmul.f32 %v586, %v674
        %v747 = vmul.f32 %v587, %v674
        %v748 = vmul.f32 %v588, %v674
        %v749 = vmul.f32 %v589, %v674
        %v750 = vmul.f32 %v590, %v679
        %v751 = vmul.f32 %v591, %v679
        %v752 = vmul.f32 %v592, %v679
        %v753 = vmul.f32 %v593, %v679
        %v754 = vmul.f32 %v594, %v684
        %v755 = vmul.f32 %v595, %v684
        %v756 = vmul.f32 %v596, %v684
        %v757 = vmul.f32 %v597, %v684
        %v758 = vmul.f32 %v598, %v689
        %v759 = vmul.f32 %v599, %v689
        %v760 = vmul.f32 %v600, %v689
        %v761 = vmul.f32 %v601, %v689
        %v762 = vmul.f32 %v602, %v694
        %v763 = vmul.f32 %v603, %v694
        %v764 = vmul.f32 %v604, %v694
        %v765 = vmul.f32 %v605, %v694
        %v766 = vmul.f32 %v606, %v699
        %v767 = vmul.f32 %v607, %v699
        %v768 = vmul.f32 %v608, %v699
        %v769 = vmul.f32 %v609, %v699
        %v770 = vmul.f32 %v610, %v704
        %v771 = vmul.f32 %v611, %v704
        %v772 = vmul.f32 %v612, %v704
        %v773 = vmul.f32 %v613, %v704
        %v774 = vmul.f32 %v614, %v709
        %v775 = vmul.f32 %v615, %v709
        %v776 = vmul.f32 %v616, %v709
        %v777 = vmul.f32 %v617, %v709
        %v778 = vmul.f32 %v618, %v714
        %v779 = vmul.f32 %v619, %v714
        %v780 = vmul.f32 %v620, %v714
        %v781 = vmul.f32 %v621, %v714
        %v782 = vmul.f32 %v622, %v719
        %v783 = vmul.f32 %v623, %v719
        %v784 = vmul.f32 %v624, %v719
        %v785 = vmul.f32 %v625, %v719
        %v786 = vmul.f32 %v626, %v724
        %v787 = vmul.f32 %v627, %v724
        %v788 = vmul.f32 %v628, %v724
        %v789 = vmul.f32 %v629, %v724
        %v790 = vadd.f32 %v726, %v730
        %v791 = vadd.f32 %v790, %v734
        %v792 = vadd.f32 %v791, %v738
        %v793 = vadd.f32 %v792, %v742
        %v794 = vadd.f32 %v793, %v746
        %v795 = vadd.f32 %v794, %v750
        %v796 = vadd.f32 %v795, %v754
        %v797 = vadd.f32 %v796, %v758
        %v798 = vadd.f32 %v797, %v762
        %v799 = vadd.f32 %v798, %v766
        %v800 = vadd.f32 %v799, %v770
        %v801 = vadd.f32 %v800, %v774
        %v802 = vadd.f32 %v801, %v778
        %v803 = vadd.f32 %v802, %v782
        %v804 = vadd.f32 %v803, %v786
        %v805 = vrot.slane %v804, 4
        %v806 = vadd.f32 %v804, %v805
        %v807 = vrot.slane %v806, 2
        %v808 = vadd.f32 %v806, %v807
        %v809 = vrot.slane %v808, 1
        %v810 = vadd.f32 %v808, %v809
        %v811 = vadd.f32 %v727, %v731
        %v812 = vadd.f32 %v811, %v735
        %v813 = vadd.f32 %v812, %v739
        %v814 = vadd.f32 %v813, %v743
        %v815 = vadd.f32 %v814, %v747
        %v816 = vadd.f32 %v815, %v751
        %v817 = vadd.f32 %v816, %v755
        %v818 = vadd.f32 %v817, %v759
        %v819 = vadd.f32 %v818, %v763
        %v820 = vadd.f32 %v819, %v767
        %v821 = vadd.f32 %v820, %v771
        %v822 = vadd.f32 %v821, %v775
        %v823 = vadd.f32 %v822, %v779
        %v824 = vadd.f32 %v823, %v783
        %v825 = vadd.f32 %v824, %v787
        %v826 = vrot.slane %v825, 4
        %v827 = vadd.f32 %v825, %v826
        %v828 = vrot.slane %v827, 2
        %v829 = vadd.f32 %v827, %v828
        %v830 = vrot.slane %v829, 1
        %v831 = vadd.f32 %v829, %v830
        %v832 = vadd.f32 %v728, %v732
        %v833 = vadd.f32 %v832, %v736
        %v834 = vadd.f32 %v833, %v740
        %v835 = vadd.f32 %v834, %v744
        %v836 = vadd.f32 %v835, %v748
        %v837 = vadd.f32 %v836, %v752
        %v838 = vadd.f32 %v837, %v756
        %v839 = vadd.f32 %v838, %v760
        %v840 = vadd.f32 %v839, %v764
        %v841 = vadd.f32 %v840, %v768
        %v842 = vadd.f32 %v841, %v772
        %v843 = vadd.f32 %v842, %v776
        %v844 = vadd.f32 %v843, %v780
        %v845 = vadd.f32 %v844, %v784
        %v846 = vadd.f32 %v845, %v788
        %v847 = vrot.slane %v846, 4
        %v848 = vadd.f32 %v846, %v847
        %v849 = vrot.slane %v848, 2
        %v850 = vadd.f32 %v848, %v849
        %v851 = vrot.slane %v850, 1
        %v852 = vadd.f32 %v850, %v851
        %v853 = vadd.f32 %v729, %v733
        %v854 = vadd.f32 %v853, %v737
        %v855 = vadd.f32 %v854, %v741
        %v856 = vadd.f32 %v855, %v745
        %v857 = vadd.f32 %v856, %v749
        %v858 = vadd.f32 %v857, %v753
        %v859 = vadd.f32 %v858, %v757
        %v860 = vadd.f32 %v859, %v761
        %v861 = vadd.f32 %v860, %v765
        %v862 = vadd.f32 %v861, %v769
        %v863 = vadd.f32 %v862, %v773
        %v864 = vadd.f32 %v863, %v777
        %v865 = vadd.f32 %v864, %v781
        %v866 = vadd.f32 %v865, %v785
        %v867 = vadd.f32 %v866, %v789
        %v868 = vrot.slane %v867, 4
        %v869 = vadd.f32 %v867, %v868
        %v870 = vrot.slane %v869, 2
        %v871 = vadd.f32 %v869, %v870
        %v872 = vrot.slane %v871, 1
        %v873 = vadd.f32 %v871, %v872
        %v874 = vadd.f32 %v810, 0.0
        %v875 = vadd.f32 %v831, 0.0
        %v876 = vadd.f32 %v852, 0.0
        %v877 = vadd.f32 %v873, 0.0
        %s878 = scalar_lea.vmem %s1, 128
        %v879 = vld [vmem:[%s878] sm:$0xff]
        %v880 = vld [vmem:[%s878 + $0x8] sm:$0xff]
        %v881 = vld [vmem:[%s878 + $0x10] sm:$0xff]
        %v882 = vld [vmem:[%s878 + $0x18] sm:$0xff]
        %v883 = vld [vmem:[%s878 + $0x20] sm:$0xff]
        %v884 = vld [vmem:[%s878 + $0x28] sm:$0xff]
        %v885 = vld [vmem:[%s878 + $0x30] sm:$0xff]
        %v886 = vld [vmem:[%s878 + $0x38] sm:$0xff]
        %v887 = vld [vmem:[%s878 + $0x40] sm:$0xff]
        %v888 = vld [vmem:[%s878 + $0x48] sm:$0xff]
        %v889 = vld [vmem:[%s878 + $0x50] sm:$0xff]
        %v890 = vld [vmem:[%s878 + $0x58] sm:$0xff]
        %v891 = vld [vmem:[%s878 + $0x60] sm:$0xff]
        %v892 = vld [vmem:[%s878 + $0x68] sm:$0xff]
        %v893 = vld [vmem:[%s878 + $0x70] sm:$0xff]
        %v894 = vld [vmem:[%s878 + $0x78] sm:$0xff]
        %s895 = scalar_lea.vmem %s2, 128
        %v896 = vld [vmem:[%s895] sm:$0xff]
        %v897 = vld [vmem:[%s895 + $0x8] sm:$0xff]
        %v898 = vld [vmem:[%s895 + $0x10] sm:$0xff]
        %v899 = vld [vmem:[%s895 + $0x18] sm:$0xff]
        %v900 = vld [vmem:[%s895 + $0x20] sm:$0xff]
        %v901 = vld [vmem:[%s895 + $0x28] sm:$0xff]
        %v902 = vld [vmem:[%s895 + $0x30] sm:$0xff]
        %v903 = vld [vmem:[%s895 + $0x38] sm:$0xff]
        %v904 = vld [vmem:[%s895 + $0x40] sm:$0xff]
        %v905 = vld [vmem:[%s895 + $0x48] sm:$0xff]
        %v906 = vld [vmem:[%s895 + $0x50] sm:$0xff]
        %v907 = vld [vmem:[%s895 + $0x58] sm:$0xff]
        %v908 = vld [vmem:[%s895 + $0x60] sm:$0xff]
        %v909 = vld [vmem:[%s895 + $0x68] sm:$0xff]
        %v910 = vld [vmem:[%s895 + $0x70] sm:$0xff]
        %v911 = vld [vmem:[%s895 + $0x78] sm:$0xff]
        %913 = vset.pattern.permute.xlu0 0
        %914 = vperm.xlu0 %913, %v879
        %v915 = vpop.permute.xlu0 %914
        %918 = vset.pattern.permute.xlu0 0
        %919 = vperm.xlu0 %918, %v880
        %v920 = vpop.permute.xlu0 %919
        %923 = vset.pattern.permute.xlu0 0
        %924 = vperm.xlu0 %923, %v881
        %v925 = vpop.permute.xlu0 %924
        %928 = vset.pattern.permute.xlu0 0
        %929 = vperm.xlu0 %928, %v882
        %v930 = vpop.permute.xlu0 %929
        %933 = vset.pattern.permute.xlu0 0
        %934 = vperm.xlu0 %933, %v883
        %v935 = vpop.permute.xlu0 %934
        %938 = vset.pattern.permute.xlu0 0
        %939 = vperm.xlu0 %938, %v884
        %v940 = vpop.permute.xlu0 %939
        %943 = vset.pattern.permute.xlu0 0
        %944 = vperm.xlu0 %943, %v885
        %v945 = vpop.permute.xlu0 %944
        %948 = vset.pattern.permute.xlu0 0
        %949 = vperm.xlu0 %948, %v886
        %v950 = vpop.permute.xlu0 %949
        %953 = vset.pattern.permute.xlu0 0
        %954 = vperm.xlu0 %953, %v887
        %v955 = vpop.permute.xlu0 %954
        %958 = vset.pattern.permute.xlu0 0
        %959 = vperm.xlu0 %958, %v888
        %v960 = vpop.permute.xlu0 %959
        %963 = vset.pattern.permute.xlu0 0
        %964 = vperm.xlu0 %963, %v889
        %v965 = vpop.permute.xlu0 %964
        %968 = vset.pattern.permute.xlu0 0
        %969 = vperm.xlu0 %968, %v890
        %v970 = vpop.permute.xlu0 %969
        %973 = vset.pattern.permute.xlu0 0
        %974 = vperm.xlu0 %973, %v891
        %v975 = vpop.permute.xlu0 %974
        %978 = vset.pattern.permute.xlu0 0
        %979 = vperm.xlu0 %978, %v892
        %v980 = vpop.permute.xlu0 %979
        %983 = vset.pattern.permute.xlu0 0
        %984 = vperm.xlu0 %983, %v893
        %v985 = vpop.permute.xlu0 %984
        %988 = vset.pattern.permute.xlu0 0
        %989 = vperm.xlu0 %988, %v894
        %v990 = vpop.permute.xlu0 %989
        %v992 = vmul.f32 %v915, %v341
        %v993 = vmul.f32 %v915, %v345
        %v994 = vmul.f32 %v915, %v349
        %v995 = vmul.f32 %v915, %v353
        %v996 = vmul.f32 %v920, %v341
        %v997 = vmul.f32 %v920, %v345
        %v998 = vmul.f32 %v920, %v349
        %v999 = vmul.f32 %v920, %v353
        %v1000 = vmul.f32 %v925, %v341
        %v1001 = vmul.f32 %v925, %v345
        %v1002 = vmul.f32 %v925, %v349
        %v1003 = vmul.f32 %v925, %v353
        %v1004 = vmul.f32 %v930, %v341
        %v1005 = vmul.f32 %v930, %v345
        %v1006 = vmul.f32 %v930, %v349
        %v1007 = vmul.f32 %v930, %v353
        %v1008 = vmul.f32 %v935, %v341
        %v1009 = vmul.f32 %v935, %v345
        %v1010 = vmul.f32 %v935, %v349
        %v1011 = vmul.f32 %v935, %v353
        %v1012 = vmul.f32 %v940, %v341
        %v1013 = vmul.f32 %v940, %v345
        %v1014 = vmul.f32 %v940, %v349
        %v1015 = vmul.f32 %v940, %v353
        %v1016 = vmul.f32 %v945, %v341
        %v1017 = vmul.f32 %v945, %v345
        %v1018 = vmul.f32 %v945, %v349
        %v1019 = vmul.f32 %v945, %v353
        %v1020 = vmul.f32 %v950, %v341
        %v1021 = vmul.f32 %v950, %v345
        %v1022 = vmul.f32 %v950, %v349
        %v1023 = vmul.f32 %v950, %v353
        %v1024 = vmul.f32 %v955, %v341
        %v1025 = vmul.f32 %v955, %v345
        %v1026 = vmul.f32 %v955, %v349
        %v1027 = vmul.f32 %v955, %v353
        %v1028 = vmul.f32 %v960, %v341
        %v1029 = vmul.f32 %v960, %v345
        %v1030 = vmul.f32 %v960, %v349
        %v1031 = vmul.f32 %v960, %v353
        %v1032 = vmul.f32 %v965, %v341
        %v1033 = vmul.f32 %v965, %v345
        %v1034 = vmul.f32 %v965, %v349
        %v1035 = vmul.f32 %v965, %v353
        %v1036 = vmul.f32 %v970, %v341
        %v1037 = vmul.f32 %v970, %v345
        %v1038 = vmul.f32 %v970, %v349
        %v1039 = vmul.f32 %v970, %v353
        %v1040 = vmul.f32 %v975, %v341
        %v1041 = vmul.f32 %v975, %v345
        %v1042 = vmul.f32 %v975, %v349
        %v1043 = vmul.f32 %v975, %v353
        %v1044 = vmul.f32 %v980, %v341
        %v1045 = vmul.f32 %v980, %v345
        %v1046 = vmul.f32 %v980, %v349
        %v1047 = vmul.f32 %v980, %v353
        %v1048 = vmul.f32 %v985, %v341
        %v1049 = vmul.f32 %v985, %v345
        %v1050 = vmul.f32 %v985, %v349
        %v1051 = vmul.f32 %v985, %v353
        %v1052 = vmul.f32 %v990, %v341
        %v1053 = vmul.f32 %v990, %v345
        %v1054 = vmul.f32 %v990, %v349
        %v1055 = vmul.f32 %v990, %v353
        %1057 = vset.pattern.permute.xlu0 0
        %1058 = vperm.xlu0 %1057, %v896
        %v1059 = vpop.permute.xlu0 %1058
        %1062 = vset.pattern.permute.xlu0 0
        %1063 = vperm.xlu0 %1062, %v897
        %v1064 = vpop.permute.xlu0 %1063
        %1067 = vset.pattern.permute.xlu0 0
        %1068 = vperm.xlu0 %1067, %v898
        %v1069 = vpop.permute.xlu0 %1068
        %1072 = vset.pattern.permute.xlu0 0
        %1073 = vperm.xlu0 %1072, %v899
        %v1074 = vpop.permute.xlu0 %1073
        %1077 = vset.pattern.permute.xlu0 0
        %1078 = vperm.xlu0 %1077, %v900
        %v1079 = vpop.permute.xlu0 %1078
        %1082 = vset.pattern.permute.xlu0 0
        %1083 = vperm.xlu0 %1082, %v901
        %v1084 = vpop.permute.xlu0 %1083
        %1087 = vset.pattern.permute.xlu0 0
        %1088 = vperm.xlu0 %1087, %v902
        %v1089 = vpop.permute.xlu0 %1088
        %1092 = vset.pattern.permute.xlu0 0
        %1093 = vperm.xlu0 %1092, %v903
        %v1094 = vpop.permute.xlu0 %1093
        %1097 = vset.pattern.permute.xlu0 0
        %1098 = vperm.xlu0 %1097, %v904
        %v1099 = vpop.permute.xlu0 %1098
        %1102 = vset.pattern.permute.xlu0 0
        %1103 = vperm.xlu0 %1102, %v905
        %v1104 = vpop.permute.xlu0 %1103
        %1107 = vset.pattern.permute.xlu0 0
        %1108 = vperm.xlu0 %1107, %v906
        %v1109 = vpop.permute.xlu0 %1108
        %1112 = vset.pattern.permute.xlu0 0
        %1113 = vperm.xlu0 %1112, %v907
        %v1114 = vpop.permute.xlu0 %1113
        %1117 = vset.pattern.permute.xlu0 0
        %1118 = vperm.xlu0 %1117, %v908
        %v1119 = vpop.permute.xlu0 %1118
        %1122 = vset.pattern.permute.xlu0 0
        %1123 = vperm.xlu0 %1122, %v909
        %v1124 = vpop.permute.xlu0 %1123
        %1127 = vset.pattern.permute.xlu0 0
        %1128 = vperm.xlu0 %1127, %v910
        %v1129 = vpop.permute.xlu0 %1128
        %1132 = vset.pattern.permute.xlu0 0
        %1133 = vperm.xlu0 %1132, %v911
        %v1134 = vpop.permute.xlu0 %1133
        %v1136 = vadd.f32 %v992, %v1059
        %v1137 = vadd.f32 %v993, %v1059
        %v1138 = vadd.f32 %v994, %v1059
        %v1139 = vadd.f32 %v995, %v1059
        %v1140 = vadd.f32 %v996, %v1064
        %v1141 = vadd.f32 %v997, %v1064
        %v1142 = vadd.f32 %v998, %v1064
        %v1143 = vadd.f32 %v999, %v1064
        %v1144 = vadd.f32 %v1000, %v1069
        %v1145 = vadd.f32 %v1001, %v1069
        %v1146 = vadd.f32 %v1002, %v1069
        %v1147 = vadd.f32 %v1003, %v1069
        %v1148 = vadd.f32 %v1004, %v1074
        %v1149 = vadd.f32 %v1005, %v1074
        %v1150 = vadd.f32 %v1006, %v1074
        %v1151 = vadd.f32 %v1007, %v1074
        %v1152 = vadd.f32 %v1008, %v1079
        %v1153 = vadd.f32 %v1009, %v1079
        %v1154 = vadd.f32 %v1010, %v1079
        %v1155 = vadd.f32 %v1011, %v1079
        %v1156 = vadd.f32 %v1012, %v1084
        %v1157 = vadd.f32 %v1013, %v1084
        %v1158 = vadd.f32 %v1014, %v1084
        %v1159 = vadd.f32 %v1015, %v1084
        %v1160 = vadd.f32 %v1016, %v1089
        %v1161 = vadd.f32 %v1017, %v1089
        %v1162 = vadd.f32 %v1018, %v1089
        %v1163 = vadd.f32 %v1019, %v1089
        %v1164 = vadd.f32 %v1020, %v1094
        %v1165 = vadd.f32 %v1021, %v1094
        %v1166 = vadd.f32 %v1022, %v1094
        %v1167 = vadd.f32 %v1023, %v1094
        %v1168 = vadd.f32 %v1024, %v1099
        %v1169 = vadd.f32 %v1025, %v1099
        %v1170 = vadd.f32 %v1026, %v1099
        %v1171 = vadd.f32 %v1027, %v1099
        %v1172 = vadd.f32 %v1028, %v1104
        %v1173 = vadd.f32 %v1029, %v1104
        %v1174 = vadd.f32 %v1030, %v1104
        %v1175 = vadd.f32 %v1031, %v1104
        %v1176 = vadd.f32 %v1032, %v1109
        %v1177 = vadd.f32 %v1033, %v1109
        %v1178 = vadd.f32 %v1034, %v1109
        %v1179 = vadd.f32 %v1035, %v1109
        %v1180 = vadd.f32 %v1036, %v1114
        %v1181 = vadd.f32 %v1037, %v1114
        %v1182 = vadd.f32 %v1038, %v1114
        %v1183 = vadd.f32 %v1039, %v1114
        %v1184 = vadd.f32 %v1040, %v1119
        %v1185 = vadd.f32 %v1041, %v1119
        %v1186 = vadd.f32 %v1042, %v1119
        %v1187 = vadd.f32 %v1043, %v1119
        %v1188 = vadd.f32 %v1044, %v1124
        %v1189 = vadd.f32 %v1045, %v1124
        %v1190 = vadd.f32 %v1046, %v1124
        %v1191 = vadd.f32 %v1047, %v1124
        %v1192 = vadd.f32 %v1048, %v1129
        %v1193 = vadd.f32 %v1049, %v1129
        %v1194 = vadd.f32 %v1050, %v1129
        %v1195 = vadd.f32 %v1051, %v1129
        %v1196 = vadd.f32 %v1052, %v1134
        %v1197 = vadd.f32 %v1053, %v1134
        %v1198 = vadd.f32 %v1054, %v1134
        %v1199 = vadd.f32 %v1055, %v1134
        %v1200 = vtanh.pop %v1136
        %v1201 = vtanh.pop %v1137
        %v1202 = vtanh.pop %v1138
        %v1203 = vtanh.pop %v1139
        %v1204 = vtanh.pop %v1140
        %v1205 = vtanh.pop %v1141
        %v1206 = vtanh.pop %v1142
        %v1207 = vtanh.pop %v1143
        %v1208 = vtanh.pop %v1144
        %v1209 = vtanh.pop %v1145
        %v1210 = vtanh.pop %v1146
        %v1211 = vtanh.pop %v1147
        %v1212 = vtanh.pop %v1148
        %v1213 = vtanh.pop %v1149
        %v1214 = vtanh.pop %v1150
        %v1215 = vtanh.pop %v1151
        %v1216 = vtanh.pop %v1152
        %v1217 = vtanh.pop %v1153
        %v1218 = vtanh.pop %v1154
        %v1219 = vtanh.pop %v1155
        %v1220 = vtanh.pop %v1156
        %v1221 = vtanh.pop %v1157
        %v1222 = vtanh.pop %v1158
        %v1223 = vtanh.pop %v1159
        %v1224 = vtanh.pop %v1160
        %v1225 = vtanh.pop %v1161
        %v1226 = vtanh.pop %v1162
        %v1227 = vtanh.pop %v1163
        %v1228 = vtanh.pop %v1164
        %v1229 = vtanh.pop %v1165
        %v1230 = vtanh.pop %v1166
        %v1231 = vtanh.pop %v1167
        %v1232 = vtanh.pop %v1168
        %v1233 = vtanh.pop %v1169
        %v1234 = vtanh.pop %v1170
        %v1235 = vtanh.pop %v1171
        %v1236 = vtanh.pop %v1172
        %v1237 = vtanh.pop %v1173
        %v1238 = vtanh.pop %v1174
        %v1239 = vtanh.pop %v1175
        %v1240 = vtanh.pop %v1176
        %v1241 = vtanh.pop %v1177
        %v1242 = vtanh.pop %v1178
        %v1243 = vtanh.pop %v1179
        %v1244 = vtanh.pop %v1180
        %v1245 = vtanh.pop %v1181
        %v1246 = vtanh.pop %v1182
        %v1247 = vtanh.pop %v1183
        %v1248 = vtanh.pop %v1184
        %v1249 = vtanh.pop %v1185
        %v1250 = vtanh.pop %v1186
        %v1251 = vtanh.pop %v1187
        %v1252 = vtanh.pop %v1188
        %v1253 = vtanh.pop %v1189
        %v1254 = vtanh.pop %v1190
        %v1255 = vtanh.pop %v1191
        %v1256 = vtanh.pop %v1192
        %v1257 = vtanh.pop %v1193
        %v1258 = vtanh.pop %v1194
        %v1259 = vtanh.pop %v1195
        %v1260 = vtanh.pop %v1196
        %v1261 = vtanh.pop %v1197
        %v1262 = vtanh.pop %v1198
        %v1263 = vtanh.pop %v1199
        %s1264 = scalar_lea.vmem %s3, 128
        %v1265 = vld [vmem:[%s1264] sm:$0xff]
        %v1266 = vld [vmem:[%s1264 + $0x8] sm:$0xff]
        %v1267 = vld [vmem:[%s1264 + $0x10] sm:$0xff]
        %v1268 = vld [vmem:[%s1264 + $0x18] sm:$0xff]
        %v1269 = vld [vmem:[%s1264 + $0x20] sm:$0xff]
        %v1270 = vld [vmem:[%s1264 + $0x28] sm:$0xff]
        %v1271 = vld [vmem:[%s1264 + $0x30] sm:$0xff]
        %v1272 = vld [vmem:[%s1264 + $0x38] sm:$0xff]
        %v1273 = vld [vmem:[%s1264 + $0x40] sm:$0xff]
        %v1274 = vld [vmem:[%s1264 + $0x48] sm:$0xff]
        %v1275 = vld [vmem:[%s1264 + $0x50] sm:$0xff]
        %v1276 = vld [vmem:[%s1264 + $0x58] sm:$0xff]
        %v1277 = vld [vmem:[%s1264 + $0x60] sm:$0xff]
        %v1278 = vld [vmem:[%s1264 + $0x68] sm:$0xff]
        %v1279 = vld [vmem:[%s1264 + $0x70] sm:$0xff]
        %v1280 = vld [vmem:[%s1264 + $0x78] sm:$0xff]
        %1282 = vset.pattern.permute.xlu0 0
        %1283 = vperm.xlu0 %1282, %v1265
        %v1284 = vpop.permute.xlu0 %1283
        %1287 = vset.pattern.permute.xlu0 0
        %1288 = vperm.xlu0 %1287, %v1266
        %v1289 = vpop.permute.xlu0 %1288
        %1292 = vset.pattern.permute.xlu0 0
        %1293 = vperm.xlu0 %1292, %v1267
        %v1294 = vpop.permute.xlu0 %1293
        %1297 = vset.pattern.permute.xlu0 0
        %1298 = vperm.xlu0 %1297, %v1268
        %v1299 = vpop.permute.xlu0 %1298
        %1302 = vset.pattern.permute.xlu0 0
        %1303 = vperm.xlu0 %1302, %v1269
        %v1304 = vpop.permute.xlu0 %1303
        %1307 = vset.pattern.permute.xlu0 0
        %1308 = vperm.xlu0 %1307, %v1270
        %v1309 = vpop.permute.xlu0 %1308
        %1312 = vset.pattern.permute.xlu0 0
        %1313 = vperm.xlu0 %1312, %v1271
        %v1314 = vpop.permute.xlu0 %1313
        %1317 = vset.pattern.permute.xlu0 0
        %1318 = vperm.xlu0 %1317, %v1272
        %v1319 = vpop.permute.xlu0 %1318
        %1322 = vset.pattern.permute.xlu0 0
        %1323 = vperm.xlu0 %1322, %v1273
        %v1324 = vpop.permute.xlu0 %1323
        %1327 = vset.pattern.permute.xlu0 0
        %1328 = vperm.xlu0 %1327, %v1274
        %v1329 = vpop.permute.xlu0 %1328
        %1332 = vset.pattern.permute.xlu0 0
        %1333 = vperm.xlu0 %1332, %v1275
        %v1334 = vpop.permute.xlu0 %1333
        %1337 = vset.pattern.permute.xlu0 0
        %1338 = vperm.xlu0 %1337, %v1276
        %v1339 = vpop.permute.xlu0 %1338
        %1342 = vset.pattern.permute.xlu0 0
        %1343 = vperm.xlu0 %1342, %v1277
        %v1344 = vpop.permute.xlu0 %1343
        %1347 = vset.pattern.permute.xlu0 0
        %1348 = vperm.xlu0 %1347, %v1278
        %v1349 = vpop.permute.xlu0 %1348
        %1352 = vset.pattern.permute.xlu0 0
        %1353 = vperm.xlu0 %1352, %v1279
        %v1354 = vpop.permute.xlu0 %1353
        %1357 = vset.pattern.permute.xlu0 0
        %1358 = vperm.xlu0 %1357, %v1280
        %v1359 = vpop.permute.xlu0 %1358
        %v1361 = vmul.f32 %v1200, %v1284
        %v1362 = vmul.f32 %v1201, %v1284
        %v1363 = vmul.f32 %v1202, %v1284
        %v1364 = vmul.f32 %v1203, %v1284
        %v1365 = vmul.f32 %v1204, %v1289
        %v1366 = vmul.f32 %v1205, %v1289
        %v1367 = vmul.f32 %v1206, %v1289
        %v1368 = vmul.f32 %v1207, %v1289
        %v1369 = vmul.f32 %v1208, %v1294
        %v1370 = vmul.f32 %v1209, %v1294
        %v1371 = vmul.f32 %v1210, %v1294
        %v1372 = vmul.f32 %v1211, %v1294
        %v1373 = vmul.f32 %v1212, %v1299
        %v1374 = vmul.f32 %v1213, %v1299
        %v1375 = vmul.f32 %v1214, %v1299
        %v1376 = vmul.f32 %v1215, %v1299
        %v1377 = vmul.f32 %v1216, %v1304
        %v1378 = vmul.f32 %v1217, %v1304
        %v1379 = vmul.f32 %v1218, %v1304
        %v1380 = vmul.f32 %v1219, %v1304
        %v1381 = vmul.f32 %v1220, %v1309
        %v1382 = vmul.f32 %v1221, %v1309
        %v1383 = vmul.f32 %v1222, %v1309
        %v1384 = vmul.f32 %v1223, %v1309
        %v1385 = vmul.f32 %v1224, %v1314
        %v1386 = vmul.f32 %v1225, %v1314
        %v1387 = vmul.f32 %v1226, %v1314
        %v1388 = vmul.f32 %v1227, %v1314
        %v1389 = vmul.f32 %v1228, %v1319
        %v1390 = vmul.f32 %v1229, %v1319
        %v1391 = vmul.f32 %v1230, %v1319
        %v1392 = vmul.f32 %v1231, %v1319
        %v1393 = vmul.f32 %v1232, %v1324
        %v1394 = vmul.f32 %v1233, %v1324
        %v1395 = vmul.f32 %v1234, %v1324
        %v1396 = vmul.f32 %v1235, %v1324
        %v1397 = vmul.f32 %v1236, %v1329
        %v1398 = vmul.f32 %v1237, %v1329
        %v1399 = vmul.f32 %v1238, %v1329
        %v1400 = vmul.f32 %v1239, %v1329
        %v1401 = vmul.f32 %v1240, %v1334
        %v1402 = vmul.f32 %v1241, %v1334
        %v1403 = vmul.f32 %v1242, %v1334
        %v1404 = vmul.f32 %v1243, %v1334
        %v1405 = vmul.f32 %v1244, %v1339
        %v1406 = vmul.f32 %v1245, %v1339
        %v1407 = vmul.f32 %v1246, %v1339
        %v1408 = vmul.f32 %v1247, %v1339
        %v1409 = vmul.f32 %v1248, %v1344
        %v1410 = vmul.f32 %v1249, %v1344
        %v1411 = vmul.f32 %v1250, %v1344
        %v1412 = vmul.f32 %v1251, %v1344
        %v1413 = vmul.f32 %v1252, %v1349
        %v1414 = vmul.f32 %v1253, %v1349
        %v1415 = vmul.f32 %v1254, %v1349
        %v1416 = vmul.f32 %v1255, %v1349
        %v1417 = vmul.f32 %v1256, %v1354
        %v1418 = vmul.f32 %v1257, %v1354
        %v1419 = vmul.f32 %v1258, %v1354
        %v1420 = vmul.f32 %v1259, %v1354
        %v1421 = vmul.f32 %v1260, %v1359
        %v1422 = vmul.f32 %v1261, %v1359
        %v1423 = vmul.f32 %v1262, %v1359
        %v1424 = vmul.f32 %v1263, %v1359
        %v1425 = vadd.f32 %v1361, %v1365
        %v1426 = vadd.f32 %v1425, %v1369
        %v1427 = vadd.f32 %v1426, %v1373
        %v1428 = vadd.f32 %v1427, %v1377
        %v1429 = vadd.f32 %v1428, %v1381
        %v1430 = vadd.f32 %v1429, %v1385
        %v1431 = vadd.f32 %v1430, %v1389
        %v1432 = vadd.f32 %v1431, %v1393
        %v1433 = vadd.f32 %v1432, %v1397
        %v1434 = vadd.f32 %v1433, %v1401
        %v1435 = vadd.f32 %v1434, %v1405
        %v1436 = vadd.f32 %v1435, %v1409
        %v1437 = vadd.f32 %v1436, %v1413
        %v1438 = vadd.f32 %v1437, %v1417
        %v1439 = vadd.f32 %v1438, %v1421
        %v1440 = vrot.slane %v1439, 4
        %v1441 = vadd.f32 %v1439, %v1440
        %v1442 = vrot.slane %v1441, 2
        %v1443 = vadd.f32 %v1441, %v1442
        %v1444 = vrot.slane %v1443, 1
        %v1445 = vadd.f32 %v1443, %v1444
        %v1446 = vadd.f32 %v1362, %v1366
        %v1447 = vadd.f32 %v1446, %v1370
        %v1448 = vadd.f32 %v1447, %v1374
        %v1449 = vadd.f32 %v1448, %v1378
        %v1450 = vadd.f32 %v1449, %v1382
        %v1451 = vadd.f32 %v1450, %v1386
        %v1452 = vadd.f32 %v1451, %v1390
        %v1453 = vadd.f32 %v1452, %v1394
        %v1454 = vadd.f32 %v1453, %v1398
        %v1455 = vadd.f32 %v1454, %v1402
        %v1456 = vadd.f32 %v1455, %v1406
        %v1457 = vadd.f32 %v1456, %v1410
        %v1458 = vadd.f32 %v1457, %v1414
        %v1459 = vadd.f32 %v1458, %v1418
        %v1460 = vadd.f32 %v1459, %v1422
        %v1461 = vrot.slane %v1460, 4
        %v1462 = vadd.f32 %v1460, %v1461
        %v1463 = vrot.slane %v1462, 2
        %v1464 = vadd.f32 %v1462, %v1463
        %v1465 = vrot.slane %v1464, 1
        %v1466 = vadd.f32 %v1464, %v1465
        %v1467 = vadd.f32 %v1363, %v1367
        %v1468 = vadd.f32 %v1467, %v1371
        %v1469 = vadd.f32 %v1468, %v1375
        %v1470 = vadd.f32 %v1469, %v1379
        %v1471 = vadd.f32 %v1470, %v1383
        %v1472 = vadd.f32 %v1471, %v1387
        %v1473 = vadd.f32 %v1472, %v1391
        %v1474 = vadd.f32 %v1473, %v1395
        %v1475 = vadd.f32 %v1474, %v1399
        %v1476 = vadd.f32 %v1475, %v1403
        %v1477 = vadd.f32 %v1476, %v1407
        %v1478 = vadd.f32 %v1477, %v1411
        %v1479 = vadd.f32 %v1478, %v1415
        %v1480 = vadd.f32 %v1479, %v1419
        %v1481 = vadd.f32 %v1480, %v1423
        %v1482 = vrot.slane %v1481, 4
        %v1483 = vadd.f32 %v1481, %v1482
        %v1484 = vrot.slane %v1483, 2
        %v1485 = vadd.f32 %v1483, %v1484
        %v1486 = vrot.slane %v1485, 1
        %v1487 = vadd.f32 %v1485, %v1486
        %v1488 = vadd.f32 %v1364, %v1368
        %v1489 = vadd.f32 %v1488, %v1372
        %v1490 = vadd.f32 %v1489, %v1376
        %v1491 = vadd.f32 %v1490, %v1380
        %v1492 = vadd.f32 %v1491, %v1384
        %v1493 = vadd.f32 %v1492, %v1388
        %v1494 = vadd.f32 %v1493, %v1392
        %v1495 = vadd.f32 %v1494, %v1396
        %v1496 = vadd.f32 %v1495, %v1400
        %v1497 = vadd.f32 %v1496, %v1404
        %v1498 = vadd.f32 %v1497, %v1408
        %v1499 = vadd.f32 %v1498, %v1412
        %v1500 = vadd.f32 %v1499, %v1416
        %v1501 = vadd.f32 %v1500, %v1420
        %v1502 = vadd.f32 %v1501, %v1424
        %v1503 = vrot.slane %v1502, 4
        %v1504 = vadd.f32 %v1502, %v1503
        %v1505 = vrot.slane %v1504, 2
        %v1506 = vadd.f32 %v1504, %v1505
        %v1507 = vrot.slane %v1506, 1
        %v1508 = vadd.f32 %v1506, %v1507
        %v1509 = vadd.f32 %v874, %v1445
        %v1510 = vadd.f32 %v875, %v1466
        %v1511 = vadd.f32 %v876, %v1487
        %v1512 = vadd.f32 %v877, %v1508
        %s1513 = scalar_lea.vmem %s1, 256
        %v1514 = vld [vmem:[%s1513] sm:$0xff]
        %v1515 = vld [vmem:[%s1513 + $0x8] sm:$0xff]
        %v1516 = vld [vmem:[%s1513 + $0x10] sm:$0xff]
        %v1517 = vld [vmem:[%s1513 + $0x18] sm:$0xff]
        %v1518 = vld [vmem:[%s1513 + $0x20] sm:$0xff]
        %v1519 = vld [vmem:[%s1513 + $0x28] sm:$0xff]
        %v1520 = vld [vmem:[%s1513 + $0x30] sm:$0xff]
        %v1521 = vld [vmem:[%s1513 + $0x38] sm:$0xff]
        %v1522 = vld [vmem:[%s1513 + $0x40] sm:$0xff]
        %v1523 = vld [vmem:[%s1513 + $0x48] sm:$0xff]
        %v1524 = vld [vmem:[%s1513 + $0x50] sm:$0xff]
        %v1525 = vld [vmem:[%s1513 + $0x58] sm:$0xff]
        %v1526 = vld [vmem:[%s1513 + $0x60] sm:$0xff]
        %v1527 = vld [vmem:[%s1513 + $0x68] sm:$0xff]
        %v1528 = vld [vmem:[%s1513 + $0x70] sm:$0xff]
        %v1529 = vld [vmem:[%s1513 + $0x78] sm:$0xff]
        %s1530 = scalar_lea.vmem %s2, 256
        %v1531 = vld [vmem:[%s1530] sm:$0xff]
        %v1532 = vld [vmem:[%s1530 + $0x8] sm:$0xff]
        %v1533 = vld [vmem:[%s1530 + $0x10] sm:$0xff]
        %v1534 = vld [vmem:[%s1530 + $0x18] sm:$0xff]
        %v1535 = vld [vmem:[%s1530 + $0x20] sm:$0xff]
        %v1536 = vld [vmem:[%s1530 + $0x28] sm:$0xff]
        %v1537 = vld [vmem:[%s1530 + $0x30] sm:$0xff]
        %v1538 = vld [vmem:[%s1530 + $0x38] sm:$0xff]
        %v1539 = vld [vmem:[%s1530 + $0x40] sm:$0xff]
        %v1540 = vld [vmem:[%s1530 + $0x48] sm:$0xff]
        %v1541 = vld [vmem:[%s1530 + $0x50] sm:$0xff]
        %v1542 = vld [vmem:[%s1530 + $0x58] sm:$0xff]
        %v1543 = vld [vmem:[%s1530 + $0x60] sm:$0xff]
        %v1544 = vld [vmem:[%s1530 + $0x68] sm:$0xff]
        %v1545 = vld [vmem:[%s1530 + $0x70] sm:$0xff]
        %v1546 = vld [vmem:[%s1530 + $0x78] sm:$0xff]
        %1548 = vset.pattern.permute.xlu0 0
        %1549 = vperm.xlu0 %1548, %v1514
        %v1550 = vpop.permute.xlu0 %1549
        %1553 = vset.pattern.permute.xlu0 0
        %1554 = vperm.xlu0 %1553, %v1515
        %v1555 = vpop.permute.xlu0 %1554
        %1558 = vset.pattern.permute.xlu0 0
        %1559 = vperm.xlu0 %1558, %v1516
        %v1560 = vpop.permute.xlu0 %1559
        %1563 = vset.pattern.permute.xlu0 0
        %1564 = vperm.xlu0 %1563, %v1517
        %v1565 = vpop.permute.xlu0 %1564
        %1568 = vset.pattern.permute.xlu0 0
        %1569 = vperm.xlu0 %1568, %v1518
        %v1570 = vpop.permute.xlu0 %1569
        %1573 = vset.pattern.permute.xlu0 0
        %1574 = vperm.xlu0 %1573, %v1519
        %v1575 = vpop.permute.xlu0 %1574
        %1578 = vset.pattern.permute.xlu0 0
        %1579 = vperm.xlu0 %1578, %v1520
        %v1580 = vpop.permute.xlu0 %1579
        %1583 = vset.pattern.permute.xlu0 0
        %1584 = vperm.xlu0 %1583, %v1521
        %v1585 = vpop.permute.xlu0 %1584
        %1588 = vset.pattern.permute.xlu0 0
        %1589 = vperm.xlu0 %1588, %v1522
        %v1590 = vpop.permute.xlu0 %1589
        %1593 = vset.pattern.permute.xlu0 0
        %1594 = vperm.xlu0 %1593, %v1523
        %v1595 = vpop.permute.xlu0 %1594
        %1598 = vset.pattern.permute.xlu0 0
        %1599 = vperm.xlu0 %1598, %v1524
        %v1600 = vpop.permute.xlu0 %1599
        %1603 = vset.pattern.permute.xlu0 0
        %1604 = vperm.xlu0 %1603, %v1525
        %v1605 = vpop.permute.xlu0 %1604
        %1608 = vset.pattern.permute.xlu0 0
        %1609 = vperm.xlu0 %1608, %v1526
        %v1610 = vpop.permute.xlu0 %1609
        %1613 = vset.pattern.permute.xlu0 0
        %1614 = vperm.xlu0 %1613, %v1527
        %v1615 = vpop.permute.xlu0 %1614
        %1618 = vset.pattern.permute.xlu0 0
        %1619 = vperm.xlu0 %1618, %v1528
        %v1620 = vpop.permute.xlu0 %1619
        %1623 = vset.pattern.permute.xlu0 0
        %1624 = vperm.xlu0 %1623, %v1529
        %v1625 = vpop.permute.xlu0 %1624
        %v1627 = vmul.f32 %v1550, %v341
        %v1628 = vmul.f32 %v1550, %v345
        %v1629 = vmul.f32 %v1550, %v349
        %v1630 = vmul.f32 %v1550, %v353
        %v1631 = vmul.f32 %v1555, %v341
        %v1632 = vmul.f32 %v1555, %v345
        %v1633 = vmul.f32 %v1555, %v349
        %v1634 = vmul.f32 %v1555, %v353
        %v1635 = vmul.f32 %v1560, %v341
        %v1636 = vmul.f32 %v1560, %v345
        %v1637 = vmul.f32 %v1560, %v349
        %v1638 = vmul.f32 %v1560, %v353
        %v1639 = vmul.f32 %v1565, %v341
        %v1640 = vmul.f32 %v1565, %v345
        %v1641 = vmul.f32 %v1565, %v349
        %v1642 = vmul.f32 %v1565, %v353
        %v1643 = vmul.f32 %v1570, %v341
        %v1644 = vmul.f32 %v1570, %v345
        %v1645 = vmul.f32 %v1570, %v349
        %v1646 = vmul.f32 %v1570, %v353
        %v1647 = vmul.f32 %v1575, %v341
        %v1648 = vmul.f32 %v1575, %v345
        %v1649 = vmul.f32 %v1575, %v349
        %v1650 = vmul.f32 %v1575, %v353
        %v1651 = vmul.f32 %v1580, %v341
        %v1652 = vmul.f32 %v1580, %v345
        %v1653 = vmul.f32 %v1580, %v349
        %v1654 = vmul.f32 %v1580, %v353
        %v1655 = vmul.f32 %v1585, %v341
        %v1656 = vmul.f32 %v1585, %v345
        %v1657 = vmul.f32 %v1585, %v349
        %v1658 = vmul.f32 %v1585, %v353
        %v1659 = vmul.f32 %v1590, %v341
        %v1660 = vmul.f32 %v1590, %v345
        %v1661 = vmul.f32 %v1590, %v349
        %v1662 = vmul.f32 %v1590, %v353
        %v1663 = vmul.f32 %v1595, %v341
        %v1664 = vmul.f32 %v1595, %v345
        %v1665 = vmul.f32 %v1595, %v349
        %v1666 = vmul.f32 %v1595, %v353
        %v1667 = vmul.f32 %v1600, %v341
        %v1668 = vmul.f32 %v1600, %v345
        %v1669 = vmul.f32 %v1600, %v349
        %v1670 = vmul.f32 %v1600, %v353
        %v1671 = vmul.f32 %v1605, %v341
        %v1672 = vmul.f32 %v1605, %v345
        %v1673 = vmul.f32 %v1605, %v349
        %v1674 = vmul.f32 %v1605, %v353
        %v1675 = vmul.f32 %v1610, %v341
        %v1676 = vmul.f32 %v1610, %v345
        %v1677 = vmul.f32 %v1610, %v349
        %v1678 = vmul.f32 %v1610, %v353
        %v1679 = vmul.f32 %v1615, %v341
        %v1680 = vmul.f32 %v1615, %v345
        %v1681 = vmul.f32 %v1615, %v349
        %v1682 = vmul.f32 %v1615, %v353
        %v1683 = vmul.f32 %v1620, %v341
        %v1684 = vmul.f32 %v1620, %v345
        %v1685 = vmul.f32 %v1620, %v349
        %v1686 = vmul.f32 %v1620, %v353
        %v1687 = vmul.f32 %v1625, %v341
        %v1688 = vmul.f32 %v1625, %v345
        %v1689 = vmul.f32 %v1625, %v349
        %v1690 = vmul.f32 %v1625, %v353
        %1692 = vset.pattern.permute.xlu0 0
        %1693 = vperm.xlu0 %1692, %v1531
        %v1694 = vpop.permute.xlu0 %1693
        %1697 = vset.pattern.permute.xlu0 0
        %1698 = vperm.xlu0 %1697, %v1532
        %v1699 = vpop.permute.xlu0 %1698
        %1702 = vset.pattern.permute.xlu0 0
        %1703 = vperm.xlu0 %1702, %v1533
        %v1704 = vpop.permute.xlu0 %1703
        %1707 = vset.pattern.permute.xlu0 0
        %1708 = vperm.xlu0 %1707, %v1534
        %v1709 = vpop.permute.xlu0 %1708
        %1712 = vset.pattern.permute.xlu0 0
        %1713 = vperm.xlu0 %1712, %v1535
        %v1714 = vpop.permute.xlu0 %1713
        %1717 = vset.pattern.permute.xlu0 0
        %1718 = vperm.xlu0 %1717, %v1536
        %v1719 = vpop.permute.xlu0 %1718
        %1722 = vset.pattern.permute.xlu0 0
        %1723 = vperm.xlu0 %1722, %v1537
        %v1724 = vpop.permute.xlu0 %1723
        %1727 = vset.pattern.permute.xlu0 0
        %1728 = vperm.xlu0 %1727, %v1538
        %v1729 = vpop.permute.xlu0 %1728
        %1732 = vset.pattern.permute.xlu0 0
        %1733 = vperm.xlu0 %1732, %v1539
        %v1734 = vpop.permute.xlu0 %1733
        %1737 = vset.pattern.permute.xlu0 0
        %1738 = vperm.xlu0 %1737, %v1540
        %v1739 = vpop.permute.xlu0 %1738
        %1742 = vset.pattern.permute.xlu0 0
        %1743 = vperm.xlu0 %1742, %v1541
        %v1744 = vpop.permute.xlu0 %1743
        %1747 = vset.pattern.permute.xlu0 0
        %1748 = vperm.xlu0 %1747, %v1542
        %v1749 = vpop.permute.xlu0 %1748
        %1752 = vset.pattern.permute.xlu0 0
        %1753 = vperm.xlu0 %1752, %v1543
        %v1754 = vpop.permute.xlu0 %1753
        %1757 = vset.pattern.permute.xlu0 0
        %1758 = vperm.xlu0 %1757, %v1544
        %v1759 = vpop.permute.xlu0 %1758
        %1762 = vset.pattern.permute.xlu0 0
        %1763 = vperm.xlu0 %1762, %v1545
        %v1764 = vpop.permute.xlu0 %1763
        %1767 = vset.pattern.permute.xlu0 0
        %1768 = vperm.xlu0 %1767, %v1546
        %v1769 = vpop.permute.xlu0 %1768
        %v1771 = vadd.f32 %v1627, %v1694
        %v1772 = vadd.f32 %v1628, %v1694
        %v1773 = vadd.f32 %v1629, %v1694
        %v1774 = vadd.f32 %v1630, %v1694
        %v1775 = vadd.f32 %v1631, %v1699
        %v1776 = vadd.f32 %v1632, %v1699
        %v1777 = vadd.f32 %v1633, %v1699
        %v1778 = vadd.f32 %v1634, %v1699
        %v1779 = vadd.f32 %v1635, %v1704
        %v1780 = vadd.f32 %v1636, %v1704
        %v1781 = vadd.f32 %v1637, %v1704
        %v1782 = vadd.f32 %v1638, %v1704
        %v1783 = vadd.f32 %v1639, %v1709
        %v1784 = vadd.f32 %v1640, %v1709
        %v1785 = vadd.f32 %v1641, %v1709
        %v1786 = vadd.f32 %v1642, %v1709
        %v1787 = vadd.f32 %v1643, %v1714
        %v1788 = vadd.f32 %v1644, %v1714
        %v1789 = vadd.f32 %v1645, %v1714
        %v1790 = vadd.f32 %v1646, %v1714
        %v1791 = vadd.f32 %v1647, %v1719
        %v1792 = vadd.f32 %v1648, %v1719
        %v1793 = vadd.f32 %v1649, %v1719
        %v1794 = vadd.f32 %v1650, %v1719
        %v1795 = vadd.f32 %v1651, %v1724
        %v1796 = vadd.f32 %v1652, %v1724
        %v1797 = vadd.f32 %v1653, %v1724
        %v1798 = vadd.f32 %v1654, %v1724
        %v1799 = vadd.f32 %v1655, %v1729
        %v1800 = vadd.f32 %v1656, %v1729
        %v1801 = vadd.f32 %v1657, %v1729
        %v1802 = vadd.f32 %v1658, %v1729
        %v1803 = vadd.f32 %v1659, %v1734
        %v1804 = vadd.f32 %v1660, %v1734
        %v1805 = vadd.f32 %v1661, %v1734
        %v1806 = vadd.f32 %v1662, %v1734
        %v1807 = vadd.f32 %v1663, %v1739
        %v1808 = vadd.f32 %v1664, %v1739
        %v1809 = vadd.f32 %v1665, %v1739
        %v1810 = vadd.f32 %v1666, %v1739
        %v1811 = vadd.f32 %v1667, %v1744
        %v1812 = vadd.f32 %v1668, %v1744
        %v1813 = vadd.f32 %v1669, %v1744
        %v1814 = vadd.f32 %v1670, %v1744
        %v1815 = vadd.f32 %v1671, %v1749
        %v1816 = vadd.f32 %v1672, %v1749
        %v1817 = vadd.f32 %v1673, %v1749
        %v1818 = vadd.f32 %v1674, %v1749
        %v1819 = vadd.f32 %v1675, %v1754
        %v1820 = vadd.f32 %v1676, %v1754
        %v1821 = vadd.f32 %v1677, %v1754
        %v1822 = vadd.f32 %v1678, %v1754
        %v1823 = vadd.f32 %v1679, %v1759
        %v1824 = vadd.f32 %v1680, %v1759
        %v1825 = vadd.f32 %v1681, %v1759
        %v1826 = vadd.f32 %v1682, %v1759
        %v1827 = vadd.f32 %v1683, %v1764
        %v1828 = vadd.f32 %v1684, %v1764
        %v1829 = vadd.f32 %v1685, %v1764
        %v1830 = vadd.f32 %v1686, %v1764
        %v1831 = vadd.f32 %v1687, %v1769
        %v1832 = vadd.f32 %v1688, %v1769
        %v1833 = vadd.f32 %v1689, %v1769
        %v1834 = vadd.f32 %v1690, %v1769
        %v1835 = vtanh.pop %v1771
        %v1836 = vtanh.pop %v1772
        %v1837 = vtanh.pop %v1773
        %v1838 = vtanh.pop %v1774
        %v1839 = vtanh.pop %v1775
        %v1840 = vtanh.pop %v1776
        %v1841 = vtanh.pop %v1777
        %v1842 = vtanh.pop %v1778
        %v1843 = vtanh.pop %v1779
        %v1844 = vtanh.pop %v1780
        %v1845 = vtanh.pop %v1781
        %v1846 = vtanh.pop %v1782
        %v1847 = vtanh.pop %v1783
        %v1848 = vtanh.pop %v1784
        %v1849 = vtanh.pop %v1785
        %v1850 = vtanh.pop %v1786
        %v1851 = vtanh.pop %v1787
        %v1852 = vtanh.pop %v1788
        %v1853 = vtanh.pop %v1789
        %v1854 = vtanh.pop %v1790
        %v1855 = vtanh.pop %v1791
        %v1856 = vtanh.pop %v1792
        %v1857 = vtanh.pop %v1793
        %v1858 = vtanh.pop %v1794
        %v1859 = vtanh.pop %v1795
        %v1860 = vtanh.pop %v1796
        %v1861 = vtanh.pop %v1797
        %v1862 = vtanh.pop %v1798
        %v1863 = vtanh.pop %v1799
        %v1864 = vtanh.pop %v1800
        %v1865 = vtanh.pop %v1801
        %v1866 = vtanh.pop %v1802
        %v1867 = vtanh.pop %v1803
        %v1868 = vtanh.pop %v1804
        %v1869 = vtanh.pop %v1805
        %v1870 = vtanh.pop %v1806
        %v1871 = vtanh.pop %v1807
        %v1872 = vtanh.pop %v1808
        %v1873 = vtanh.pop %v1809
        %v1874 = vtanh.pop %v1810
        %v1875 = vtanh.pop %v1811
        %v1876 = vtanh.pop %v1812
        %v1877 = vtanh.pop %v1813
        %v1878 = vtanh.pop %v1814
        %v1879 = vtanh.pop %v1815
        %v1880 = vtanh.pop %v1816
        %v1881 = vtanh.pop %v1817
        %v1882 = vtanh.pop %v1818
        %v1883 = vtanh.pop %v1819
        %v1884 = vtanh.pop %v1820
        %v1885 = vtanh.pop %v1821
        %v1886 = vtanh.pop %v1822
        %v1887 = vtanh.pop %v1823
        %v1888 = vtanh.pop %v1824
        %v1889 = vtanh.pop %v1825
        %v1890 = vtanh.pop %v1826
        %v1891 = vtanh.pop %v1827
        %v1892 = vtanh.pop %v1828
        %v1893 = vtanh.pop %v1829
        %v1894 = vtanh.pop %v1830
        %v1895 = vtanh.pop %v1831
        %v1896 = vtanh.pop %v1832
        %v1897 = vtanh.pop %v1833
        %v1898 = vtanh.pop %v1834
        %s1899 = scalar_lea.vmem %s3, 256
        %v1900 = vld [vmem:[%s1899] sm:$0xff]
        %v1901 = vld [vmem:[%s1899 + $0x8] sm:$0xff]
        %v1902 = vld [vmem:[%s1899 + $0x10] sm:$0xff]
        %v1903 = vld [vmem:[%s1899 + $0x18] sm:$0xff]
        %v1904 = vld [vmem:[%s1899 + $0x20] sm:$0xff]
        %v1905 = vld [vmem:[%s1899 + $0x28] sm:$0xff]
        %v1906 = vld [vmem:[%s1899 + $0x30] sm:$0xff]
        %v1907 = vld [vmem:[%s1899 + $0x38] sm:$0xff]
        %v1908 = vld [vmem:[%s1899 + $0x40] sm:$0xff]
        %v1909 = vld [vmem:[%s1899 + $0x48] sm:$0xff]
        %v1910 = vld [vmem:[%s1899 + $0x50] sm:$0xff]
        %v1911 = vld [vmem:[%s1899 + $0x58] sm:$0xff]
        %v1912 = vld [vmem:[%s1899 + $0x60] sm:$0xff]
        %v1913 = vld [vmem:[%s1899 + $0x68] sm:$0xff]
        %v1914 = vld [vmem:[%s1899 + $0x70] sm:$0xff]
        %v1915 = vld [vmem:[%s1899 + $0x78] sm:$0xff]
        %1917 = vset.pattern.permute.xlu0 0
        %1918 = vperm.xlu0 %1917, %v1900
        %v1919 = vpop.permute.xlu0 %1918
        %1922 = vset.pattern.permute.xlu0 0
        %1923 = vperm.xlu0 %1922, %v1901
        %v1924 = vpop.permute.xlu0 %1923
        %1927 = vset.pattern.permute.xlu0 0
        %1928 = vperm.xlu0 %1927, %v1902
        %v1929 = vpop.permute.xlu0 %1928
        %1932 = vset.pattern.permute.xlu0 0
        %1933 = vperm.xlu0 %1932, %v1903
        %v1934 = vpop.permute.xlu0 %1933
        %1937 = vset.pattern.permute.xlu0 0
        %1938 = vperm.xlu0 %1937, %v1904
        %v1939 = vpop.permute.xlu0 %1938
        %1942 = vset.pattern.permute.xlu0 0
        %1943 = vperm.xlu0 %1942, %v1905
        %v1944 = vpop.permute.xlu0 %1943
        %1947 = vset.pattern.permute.xlu0 0
        %1948 = vperm.xlu0 %1947, %v1906
        %v1949 = vpop.permute.xlu0 %1948
        %1952 = vset.pattern.permute.xlu0 0
        %1953 = vperm.xlu0 %1952, %v1907
        %v1954 = vpop.permute.xlu0 %1953
        %1957 = vset.pattern.permute.xlu0 0
        %1958 = vperm.xlu0 %1957, %v1908
        %v1959 = vpop.permute.xlu0 %1958
        %1962 = vset.pattern.permute.xlu0 0
        %1963 = vperm.xlu0 %1962, %v1909
        %v1964 = vpop.permute.xlu0 %1963
        %1967 = vset.pattern.permute.xlu0 0
        %1968 = vperm.xlu0 %1967, %v1910
        %v1969 = vpop.permute.xlu0 %1968
        %1972 = vset.pattern.permute.xlu0 0
        %1973 = vperm.xlu0 %1972, %v1911
        %v1974 = vpop.permute.xlu0 %1973
        %1977 = vset.pattern.permute.xlu0 0
        %1978 = vperm.xlu0 %1977, %v1912
        %v1979 = vpop.permute.xlu0 %1978
        %1982 = vset.pattern.permute.xlu0 0
        %1983 = vperm.xlu0 %1982, %v1913
        %v1984 = vpop.permute.xlu0 %1983
        %1987 = vset.pattern.permute.xlu0 0
        %1988 = vperm.xlu0 %1987, %v1914
        %v1989 = vpop.permute.xlu0 %1988
        %1992 = vset.pattern.permute.xlu0 0
        %1993 = vperm.xlu0 %1992, %v1915
        %v1994 = vpop.permute.xlu0 %1993
        %v1996 = vmul.f32 %v1835, %v1919
        %v1997 = vmul.f32 %v1836, %v1919
        %v1998 = vmul.f32 %v1837, %v1919
        %v1999 = vmul.f32 %v1838, %v1919
        %v2000 = vmul.f32 %v1839, %v1924
        %v2001 = vmul.f32 %v1840, %v1924
        %v2002 = vmul.f32 %v1841, %v1924
        %v2003 = vmul.f32 %v1842, %v1924
        %v2004 = vmul.f32 %v1843, %v1929
        %v2005 = vmul.f32 %v1844, %v1929
        %v2006 = vmul.f32 %v1845, %v1929
        %v2007 = vmul.f32 %v1846, %v1929
        %v2008 = vmul.f32 %v1847, %v1934
        %v2009 = vmul.f32 %v1848, %v1934
        %v2010 = vmul.f32 %v1849, %v1934
        %v2011 = vmul.f32 %v1850, %v1934
        %v2012 = vmul.f32 %v1851, %v1939
        %v2013 = vmul.f32 %v1852, %v1939
        %v2014 = vmul.f32 %v1853, %v1939
        %v2015 = vmul.f32 %v1854, %v1939
        %v2016 = vmul.f32 %v1855, %v1944
        %v2017 = vmul.f32 %v1856, %v1944
        %v2018 = vmul.f32 %v1857, %v1944
        %v2019 = vmul.f32 %v1858, %v1944
        %v2020 = vmul.f32 %v1859, %v1949
        %v2021 = vmul.f32 %v1860, %v1949
        %v2022 = vmul.f32 %v1861, %v1949
        %v2023 = vmul.f32 %v1862, %v1949
        %v2024 = vmul.f32 %v1863, %v1954
        %v2025 = vmul.f32 %v1864, %v1954
        %v2026 = vmul.f32 %v1865, %v1954
        %v2027 = vmul.f32 %v1866, %v1954
        %v2028 = vmul.f32 %v1867, %v1959
        %v2029 = vmul.f32 %v1868, %v1959
        %v2030 = vmul.f32 %v1869, %v1959
        %v2031 = vmul.f32 %v1870, %v1959
        %v2032 = vmul.f32 %v1871, %v1964
        %v2033 = vmul.f32 %v1872, %v1964
        %v2034 = vmul.f32 %v1873, %v1964
        %v2035 = vmul.f32 %v1874, %v1964
        %v2036 = vmul.f32 %v1875, %v1969
        %v2037 = vmul.f32 %v1876, %v1969
        %v2038 = vmul.f32 %v1877, %v1969
        %v2039 = vmul.f32 %v1878, %v1969
        %v2040 = vmul.f32 %v1879, %v1974
        %v2041 = vmul.f32 %v1880, %v1974
        %v2042 = vmul.f32 %v1881, %v1974
        %v2043 = vmul.f32 %v1882, %v1974
        %v2044 = vmul.f32 %v1883, %v1979
        %v2045 = vmul.f32 %v1884, %v1979
        %v2046 = vmul.f32 %v1885, %v1979
        %v2047 = vmul.f32 %v1886, %v1979
        %v2048 = vmul.f32 %v1887, %v1984
        %v2049 = vmul.f32 %v1888, %v1984
        %v2050 = vmul.f32 %v1889, %v1984
        %v2051 = vmul.f32 %v1890, %v1984
        %v2052 = vmul.f32 %v1891, %v1989
        %v2053 = vmul.f32 %v1892, %v1989
        %v2054 = vmul.f32 %v1893, %v1989
        %v2055 = vmul.f32 %v1894, %v1989
        %v2056 = vmul.f32 %v1895, %v1994
        %v2057 = vmul.f32 %v1896, %v1994
        %v2058 = vmul.f32 %v1897, %v1994
        %v2059 = vmul.f32 %v1898, %v1994
        %v2060 = vadd.f32 %v1996, %v2000
        %v2061 = vadd.f32 %v2060, %v2004
        %v2062 = vadd.f32 %v2061, %v2008
        %v2063 = vadd.f32 %v2062, %v2012
        %v2064 = vadd.f32 %v2063, %v2016
        %v2065 = vadd.f32 %v2064, %v2020
        %v2066 = vadd.f32 %v2065, %v2024
        %v2067 = vadd.f32 %v2066, %v2028
        %v2068 = vadd.f32 %v2067, %v2032
        %v2069 = vadd.f32 %v2068, %v2036
        %v2070 = vadd.f32 %v2069, %v2040
        %v2071 = vadd.f32 %v2070, %v2044
        %v2072 = vadd.f32 %v2071, %v2048
        %v2073 = vadd.f32 %v2072, %v2052
        %v2074 = vadd.f32 %v2073, %v2056
        %v2075 = vrot.slane %v2074, 4
        %v2076 = vadd.f32 %v2074, %v2075
        %v2077 = vrot.slane %v2076, 2
        %v2078 = vadd.f32 %v2076, %v2077
        %v2079 = vrot.slane %v2078, 1
        %v2080 = vadd.f32 %v2078, %v2079
        %v2081 = vadd.f32 %v1997, %v2001
        %v2082 = vadd.f32 %v2081, %v2005
        %v2083 = vadd.f32 %v2082, %v2009
        %v2084 = vadd.f32 %v2083, %v2013
        %v2085 = vadd.f32 %v2084, %v2017
        %v2086 = vadd.f32 %v2085, %v2021
        %v2087 = vadd.f32 %v2086, %v2025
        %v2088 = vadd.f32 %v2087, %v2029
        %v2089 = vadd.f32 %v2088, %v2033
        %v2090 = vadd.f32 %v2089, %v2037
        %v2091 = vadd.f32 %v2090, %v2041
        %v2092 = vadd.f32 %v2091, %v2045
        %v2093 = vadd.f32 %v2092, %v2049
        %v2094 = vadd.f32 %v2093, %v2053
        %v2095 = vadd.f32 %v2094, %v2057
        %v2096 = vrot.slane %v2095, 4
        %v2097 = vadd.f32 %v2095, %v2096
        %v2098 = vrot.slane %v2097, 2
        %v2099 = vadd.f32 %v2097, %v2098
        %v2100 = vrot.slane %v2099, 1
        %v2101 = vadd.f32 %v2099, %v2100
        %v2102 = vadd.f32 %v1998, %v2002
        %v2103 = vadd.f32 %v2102, %v2006
        %v2104 = vadd.f32 %v2103, %v2010
        %v2105 = vadd.f32 %v2104, %v2014
        %v2106 = vadd.f32 %v2105, %v2018
        %v2107 = vadd.f32 %v2106, %v2022
        %v2108 = vadd.f32 %v2107, %v2026
        %v2109 = vadd.f32 %v2108, %v2030
        %v2110 = vadd.f32 %v2109, %v2034
        %v2111 = vadd.f32 %v2110, %v2038
        %v2112 = vadd.f32 %v2111, %v2042
        %v2113 = vadd.f32 %v2112, %v2046
        %v2114 = vadd.f32 %v2113, %v2050
        %v2115 = vadd.f32 %v2114, %v2054
        %v2116 = vadd.f32 %v2115, %v2058
        %v2117 = vrot.slane %v2116, 4
        %v2118 = vadd.f32 %v2116, %v2117
        %v2119 = vrot.slane %v2118, 2
        %v2120 = vadd.f32 %v2118, %v2119
        %v2121 = vrot.slane %v2120, 1
        %v2122 = vadd.f32 %v2120, %v2121
        %v2123 = vadd.f32 %v1999, %v2003
        %v2124 = vadd.f32 %v2123, %v2007
        %v2125 = vadd.f32 %v2124, %v2011
        %v2126 = vadd.f32 %v2125, %v2015
        %v2127 = vadd.f32 %v2126, %v2019
        %v2128 = vadd.f32 %v2127, %v2023
        %v2129 = vadd.f32 %v2128, %v2027
        %v2130 = vadd.f32 %v2129, %v2031
        %v2131 = vadd.f32 %v2130, %v2035
        %v2132 = vadd.f32 %v2131, %v2039
        %v2133 = vadd.f32 %v2132, %v2043
        %v2134 = vadd.f32 %v2133, %v2047
        %v2135 = vadd.f32 %v2134, %v2051
        %v2136 = vadd.f32 %v2135, %v2055
        %v2137 = vadd.f32 %v2136, %v2059
        %v2138 = vrot.slane %v2137, 4
        %v2139 = vadd.f32 %v2137, %v2138
        %v2140 = vrot.slane %v2139, 2
        %v2141 = vadd.f32 %v2139, %v2140
        %v2142 = vrot.slane %v2141, 1
        %v2143 = vadd.f32 %v2141, %v2142
        %v2144 = vadd.f32 %v1509, %v2080
        %v2145 = vadd.f32 %v1510, %v2101
        %v2146 = vadd.f32 %v1511, %v2122
        %v2147 = vadd.f32 %v1512, %v2143
        %s2148 = scalar_lea.vmem %s1, 384
        %v2149 = vld [vmem:[%s2148] sm:$0xff]
        %v2150 = vld [vmem:[%s2148 + $0x8] sm:$0xff]
        %v2151 = vld [vmem:[%s2148 + $0x10] sm:$0xff]
        %v2152 = vld [vmem:[%s2148 + $0x18] sm:$0xff]
        %v2153 = vld [vmem:[%s2148 + $0x20] sm:$0xff]
        %v2154 = vld [vmem:[%s2148 + $0x28] sm:$0xff]
        %v2155 = vld [vmem:[%s2148 + $0x30] sm:$0xff]
        %v2156 = vld [vmem:[%s2148 + $0x38] sm:$0xff]
        %v2157 = vld [vmem:[%s2148 + $0x40] sm:$0xff]
        %v2158 = vld [vmem:[%s2148 + $0x48] sm:$0xff]
        %v2159 = vld [vmem:[%s2148 + $0x50] sm:$0xff]
        %v2160 = vld [vmem:[%s2148 + $0x58] sm:$0xff]
        %v2161 = vld [vmem:[%s2148 + $0x60] sm:$0xff]
        %v2162 = vld [vmem:[%s2148 + $0x68] sm:$0xff]
        %v2163 = vld [vmem:[%s2148 + $0x70] sm:$0xff]
        %v2164 = vld [vmem:[%s2148 + $0x78] sm:$0xff]
        %s2165 = scalar_lea.vmem %s2, 384
        %v2166 = vld [vmem:[%s2165] sm:$0xff]
        %v2167 = vld [vmem:[%s2165 + $0x8] sm:$0xff]
        %v2168 = vld [vmem:[%s2165 + $0x10] sm:$0xff]
        %v2169 = vld [vmem:[%s2165 + $0x18] sm:$0xff]
        %v2170 = vld [vmem:[%s2165 + $0x20] sm:$0xff]
        %v2171 = vld [vmem:[%s2165 + $0x28] sm:$0xff]
        %v2172 = vld [vmem:[%s2165 + $0x30] sm:$0xff]
        %v2173 = vld [vmem:[%s2165 + $0x38] sm:$0xff]
        %v2174 = vld [vmem:[%s2165 + $0x40] sm:$0xff]
        %v2175 = vld [vmem:[%s2165 + $0x48] sm:$0xff]
        %v2176 = vld [vmem:[%s2165 + $0x50] sm:$0xff]
        %v2177 = vld [vmem:[%s2165 + $0x58] sm:$0xff]
        %v2178 = vld [vmem:[%s2165 + $0x60] sm:$0xff]
        %v2179 = vld [vmem:[%s2165 + $0x68] sm:$0xff]
        %v2180 = vld [vmem:[%s2165 + $0x70] sm:$0xff]
        %v2181 = vld [vmem:[%s2165 + $0x78] sm:$0xff]
        %2183 = vset.pattern.permute.xlu0 0
        %2184 = vperm.xlu0 %2183, %v2149
        %v2185 = vpop.permute.xlu0 %2184
        %2188 = vset.pattern.permute.xlu0 0
        %2189 = vperm.xlu0 %2188, %v2150
        %v2190 = vpop.permute.xlu0 %2189
        %2193 = vset.pattern.permute.xlu0 0
        %2194 = vperm.xlu0 %2193, %v2151
        %v2195 = vpop.permute.xlu0 %2194
        %2198 = vset.pattern.permute.xlu0 0
        %2199 = vperm.xlu0 %2198, %v2152
        %v2200 = vpop.permute.xlu0 %2199
        %2203 = vset.pattern.permute.xlu0 0
        %2204 = vperm.xlu0 %2203, %v2153
        %v2205 = vpop.permute.xlu0 %2204
        %2208 = vset.pattern.permute.xlu0 0
        %2209 = vperm.xlu0 %2208, %v2154
        %v2210 = vpop.permute.xlu0 %2209
        %2213 = vset.pattern.permute.xlu0 0
        %2214 = vperm.xlu0 %2213, %v2155
        %v2215 = vpop.permute.xlu0 %2214
        %2218 = vset.pattern.permute.xlu0 0
        %2219 = vperm.xlu0 %2218, %v2156
        %v2220 = vpop.permute.xlu0 %2219
        %2223 = vset.pattern.permute.xlu0 0
        %2224 = vperm.xlu0 %2223, %v2157
        %v2225 = vpop.permute.xlu0 %2224
        %2228 = vset.pattern.permute.xlu0 0
        %2229 = vperm.xlu0 %2228, %v2158
        %v2230 = vpop.permute.xlu0 %2229
        %2233 = vset.pattern.permute.xlu0 0
        %2234 = vperm.xlu0 %2233, %v2159
        %v2235 = vpop.permute.xlu0 %2234
        %2238 = vset.pattern.permute.xlu0 0
        %2239 = vperm.xlu0 %2238, %v2160
        %v2240 = vpop.permute.xlu0 %2239
        %2243 = vset.pattern.permute.xlu0 0
        %2244 = vperm.xlu0 %2243, %v2161
        %v2245 = vpop.permute.xlu0 %2244
        %2248 = vset.pattern.permute.xlu0 0
        %2249 = vperm.xlu0 %2248, %v2162
        %v2250 = vpop.permute.xlu0 %2249
        %2253 = vset.pattern.permute.xlu0 0
        %2254 = vperm.xlu0 %2253, %v2163
        %v2255 = vpop.permute.xlu0 %2254
        %2258 = vset.pattern.permute.xlu0 0
        %2259 = vperm.xlu0 %2258, %v2164
        %v2260 = vpop.permute.xlu0 %2259
        %v2262 = vmul.f32 %v2185, %v341
        %v2263 = vmul.f32 %v2185, %v345
        %v2264 = vmul.f32 %v2185, %v349
        %v2265 = vmul.f32 %v2185, %v353
        %v2266 = vmul.f32 %v2190, %v341
        %v2267 = vmul.f32 %v2190, %v345
        %v2268 = vmul.f32 %v2190, %v349
        %v2269 = vmul.f32 %v2190, %v353
        %v2270 = vmul.f32 %v2195, %v341
        %v2271 = vmul.f32 %v2195, %v345
        %v2272 = vmul.f32 %v2195, %v349
        %v2273 = vmul.f32 %v2195, %v353
        %v2274 = vmul.f32 %v2200, %v341
        %v2275 = vmul.f32 %v2200, %v345
        %v2276 = vmul.f32 %v2200, %v349
        %v2277 = vmul.f32 %v2200, %v353
        %v2278 = vmul.f32 %v2205, %v341
        %v2279 = vmul.f32 %v2205, %v345
        %v2280 = vmul.f32 %v2205, %v349
        %v2281 = vmul.f32 %v2205, %v353
        %v2282 = vmul.f32 %v2210, %v341
        %v2283 = vmul.f32 %v2210, %v345
        %v2284 = vmul.f32 %v2210, %v349
        %v2285 = vmul.f32 %v2210, %v353
        %v2286 = vmul.f32 %v2215, %v341
        %v2287 = vmul.f32 %v2215, %v345
        %v2288 = vmul.f32 %v2215, %v349
        %v2289 = vmul.f32 %v2215, %v353
        %v2290 = vmul.f32 %v2220, %v341
        %v2291 = vmul.f32 %v2220, %v345
        %v2292 = vmul.f32 %v2220, %v349
        %v2293 = vmul.f32 %v2220, %v353
        %v2294 = vmul.f32 %v2225, %v341
        %v2295 = vmul.f32 %v2225, %v345
        %v2296 = vmul.f32 %v2225, %v349
        %v2297 = vmul.f32 %v2225, %v353
        %v2298 = vmul.f32 %v2230, %v341
        %v2299 = vmul.f32 %v2230, %v345
        %v2300 = vmul.f32 %v2230, %v349
        %v2301 = vmul.f32 %v2230, %v353
        %v2302 = vmul.f32 %v2235, %v341
        %v2303 = vmul.f32 %v2235, %v345
        %v2304 = vmul.f32 %v2235, %v349
        %v2305 = vmul.f32 %v2235, %v353
        %v2306 = vmul.f32 %v2240, %v341
        %v2307 = vmul.f32 %v2240, %v345
        %v2308 = vmul.f32 %v2240, %v349
        %v2309 = vmul.f32 %v2240, %v353
        %v2310 = vmul.f32 %v2245, %v341
        %v2311 = vmul.f32 %v2245, %v345
        %v2312 = vmul.f32 %v2245, %v349
        %v2313 = vmul.f32 %v2245, %v353
        %v2314 = vmul.f32 %v2250, %v341
        %v2315 = vmul.f32 %v2250, %v345
        %v2316 = vmul.f32 %v2250, %v349
        %v2317 = vmul.f32 %v2250, %v353
        %v2318 = vmul.f32 %v2255, %v341
        %v2319 = vmul.f32 %v2255, %v345
        %v2320 = vmul.f32 %v2255, %v349
        %v2321 = vmul.f32 %v2255, %v353
        %v2322 = vmul.f32 %v2260, %v341
        %v2323 = vmul.f32 %v2260, %v345
        %v2324 = vmul.f32 %v2260, %v349
        %v2325 = vmul.f32 %v2260, %v353
        %2327 = vset.pattern.permute.xlu0 0
        %2328 = vperm.xlu0 %2327, %v2166
        %v2329 = vpop.permute.xlu0 %2328
        %2332 = vset.pattern.permute.xlu0 0
        %2333 = vperm.xlu0 %2332, %v2167
        %v2334 = vpop.permute.xlu0 %2333
        %2337 = vset.pattern.permute.xlu0 0
        %2338 = vperm.xlu0 %2337, %v2168
        %v2339 = vpop.permute.xlu0 %2338
        %2342 = vset.pattern.permute.xlu0 0
        %2343 = vperm.xlu0 %2342, %v2169
        %v2344 = vpop.permute.xlu0 %2343
        %2347 = vset.pattern.permute.xlu0 0
        %2348 = vperm.xlu0 %2347, %v2170
        %v2349 = vpop.permute.xlu0 %2348
        %2352 = vset.pattern.permute.xlu0 0
        %2353 = vperm.xlu0 %2352, %v2171
        %v2354 = vpop.permute.xlu0 %2353
        %2357 = vset.pattern.permute.xlu0 0
        %2358 = vperm.xlu0 %2357, %v2172
        %v2359 = vpop.permute.xlu0 %2358
        %2362 = vset.pattern.permute.xlu0 0
        %2363 = vperm.xlu0 %2362, %v2173
        %v2364 = vpop.permute.xlu0 %2363
        %2367 = vset.pattern.permute.xlu0 0
        %2368 = vperm.xlu0 %2367, %v2174
        %v2369 = vpop.permute.xlu0 %2368
        %2372 = vset.pattern.permute.xlu0 0
        %2373 = vperm.xlu0 %2372, %v2175
        %v2374 = vpop.permute.xlu0 %2373
        %2377 = vset.pattern.permute.xlu0 0
        %2378 = vperm.xlu0 %2377, %v2176
        %v2379 = vpop.permute.xlu0 %2378
        %2382 = vset.pattern.permute.xlu0 0
        %2383 = vperm.xlu0 %2382, %v2177
        %v2384 = vpop.permute.xlu0 %2383
        %2387 = vset.pattern.permute.xlu0 0
        %2388 = vperm.xlu0 %2387, %v2178
        %v2389 = vpop.permute.xlu0 %2388
        %2392 = vset.pattern.permute.xlu0 0
        %2393 = vperm.xlu0 %2392, %v2179
        %v2394 = vpop.permute.xlu0 %2393
        %2397 = vset.pattern.permute.xlu0 0
        %2398 = vperm.xlu0 %2397, %v2180
        %v2399 = vpop.permute.xlu0 %2398
        %2402 = vset.pattern.permute.xlu0 0
        %2403 = vperm.xlu0 %2402, %v2181
        %v2404 = vpop.permute.xlu0 %2403
        %v2406 = vadd.f32 %v2262, %v2329
        %v2407 = vadd.f32 %v2263, %v2329
        %v2408 = vadd.f32 %v2264, %v2329
        %v2409 = vadd.f32 %v2265, %v2329
        %v2410 = vadd.f32 %v2266, %v2334
        %v2411 = vadd.f32 %v2267, %v2334
        %v2412 = vadd.f32 %v2268, %v2334
        %v2413 = vadd.f32 %v2269, %v2334
        %v2414 = vadd.f32 %v2270, %v2339
        %v2415 = vadd.f32 %v2271, %v2339
        %v2416 = vadd.f32 %v2272, %v2339
        %v2417 = vadd.f32 %v2273, %v2339
        %v2418 = vadd.f32 %v2274, %v2344
        %v2419 = vadd.f32 %v2275, %v2344
        %v2420 = vadd.f32 %v2276, %v2344
        %v2421 = vadd.f32 %v2277, %v2344
        %v2422 = vadd.f32 %v2278, %v2349
        %v2423 = vadd.f32 %v2279, %v2349
        %v2424 = vadd.f32 %v2280, %v2349
        %v2425 = vadd.f32 %v2281, %v2349
        %v2426 = vadd.f32 %v2282, %v2354
        %v2427 = vadd.f32 %v2283, %v2354
        %v2428 = vadd.f32 %v2284, %v2354
        %v2429 = vadd.f32 %v2285, %v2354
        %v2430 = vadd.f32 %v2286, %v2359
        %v2431 = vadd.f32 %v2287, %v2359
        %v2432 = vadd.f32 %v2288, %v2359
        %v2433 = vadd.f32 %v2289, %v2359
        %v2434 = vadd.f32 %v2290, %v2364
        %v2435 = vadd.f32 %v2291, %v2364
        %v2436 = vadd.f32 %v2292, %v2364
        %v2437 = vadd.f32 %v2293, %v2364
        %v2438 = vadd.f32 %v2294, %v2369
        %v2439 = vadd.f32 %v2295, %v2369
        %v2440 = vadd.f32 %v2296, %v2369
        %v2441 = vadd.f32 %v2297, %v2369
        %v2442 = vadd.f32 %v2298, %v2374
        %v2443 = vadd.f32 %v2299, %v2374
        %v2444 = vadd.f32 %v2300, %v2374
        %v2445 = vadd.f32 %v2301, %v2374
        %v2446 = vadd.f32 %v2302, %v2379
        %v2447 = vadd.f32 %v2303, %v2379
        %v2448 = vadd.f32 %v2304, %v2379
        %v2449 = vadd.f32 %v2305, %v2379
        %v2450 = vadd.f32 %v2306, %v2384
        %v2451 = vadd.f32 %v2307, %v2384
        %v2452 = vadd.f32 %v2308, %v2384
        %v2453 = vadd.f32 %v2309, %v2384
        %v2454 = vadd.f32 %v2310, %v2389
        %v2455 = vadd.f32 %v2311, %v2389
        %v2456 = vadd.f32 %v2312, %v2389
        %v2457 = vadd.f32 %v2313, %v2389
        %v2458 = vadd.f32 %v2314, %v2394
        %v2459 = vadd.f32 %v2315, %v2394
        %v2460 = vadd.f32 %v2316, %v2394
        %v2461 = vadd.f32 %v2317, %v2394
        %v2462 = vadd.f32 %v2318, %v2399
        %v2463 = vadd.f32 %v2319, %v2399
        %v2464 = vadd.f32 %v2320, %v2399
        %v2465 = vadd.f32 %v2321, %v2399
        %v2466 = vadd.f32 %v2322, %v2404
        %v2467 = vadd.f32 %v2323, %v2404
        %v2468 = vadd.f32 %v2324, %v2404
        %v2469 = vadd.f32 %v2325, %v2404
        %v2470 = vtanh.pop %v2406
        %v2471 = vtanh.pop %v2407
        %v2472 = vtanh.pop %v2408
        %v2473 = vtanh.pop %v2409
        %v2474 = vtanh.pop %v2410
        %v2475 = vtanh.pop %v2411
        %v2476 = vtanh.pop %v2412
        %v2477 = vtanh.pop %v2413
        %v2478 = vtanh.pop %v2414
        %v2479 = vtanh.pop %v2415
        %v2480 = vtanh.pop %v2416
        %v2481 = vtanh.pop %v2417
        %v2482 = vtanh.pop %v2418
        %v2483 = vtanh.pop %v2419
        %v2484 = vtanh.pop %v2420
        %v2485 = vtanh.pop %v2421
        %v2486 = vtanh.pop %v2422
        %v2487 = vtanh.pop %v2423
        %v2488 = vtanh.pop %v2424
        %v2489 = vtanh.pop %v2425
        %v2490 = vtanh.pop %v2426
        %v2491 = vtanh.pop %v2427
        %v2492 = vtanh.pop %v2428
        %v2493 = vtanh.pop %v2429
        %v2494 = vtanh.pop %v2430
        %v2495 = vtanh.pop %v2431
        %v2496 = vtanh.pop %v2432
        %v2497 = vtanh.pop %v2433
        %v2498 = vtanh.pop %v2434
        %v2499 = vtanh.pop %v2435
        %v2500 = vtanh.pop %v2436
        %v2501 = vtanh.pop %v2437
        %v2502 = vtanh.pop %v2438
        %v2503 = vtanh.pop %v2439
        %v2504 = vtanh.pop %v2440
        %v2505 = vtanh.pop %v2441
        %v2506 = vtanh.pop %v2442
        %v2507 = vtanh.pop %v2443
        %v2508 = vtanh.pop %v2444
        %v2509 = vtanh.pop %v2445
        %v2510 = vtanh.pop %v2446
        %v2511 = vtanh.pop %v2447
        %v2512 = vtanh.pop %v2448
        %v2513 = vtanh.pop %v2449
        %v2514 = vtanh.pop %v2450
        %v2515 = vtanh.pop %v2451
        %v2516 = vtanh.pop %v2452
        %v2517 = vtanh.pop %v2453
        %v2518 = vtanh.pop %v2454
        %v2519 = vtanh.pop %v2455
        %v2520 = vtanh.pop %v2456
        %v2521 = vtanh.pop %v2457
        %v2522 = vtanh.pop %v2458
        %v2523 = vtanh.pop %v2459
        %v2524 = vtanh.pop %v2460
        %v2525 = vtanh.pop %v2461
        %v2526 = vtanh.pop %v2462
        %v2527 = vtanh.pop %v2463
        %v2528 = vtanh.pop %v2464
        %v2529 = vtanh.pop %v2465
        %v2530 = vtanh.pop %v2466
        %v2531 = vtanh.pop %v2467
        %v2532 = vtanh.pop %v2468
        %v2533 = vtanh.pop %v2469
        %s2534 = scalar_lea.vmem %s3, 384
        %v2535 = vld [vmem:[%s2534] sm:$0xff]
        %v2536 = vld [vmem:[%s2534 + $0x8] sm:$0xff]
        %v2537 = vld [vmem:[%s2534 + $0x10] sm:$0xff]
        %v2538 = vld [vmem:[%s2534 + $0x18] sm:$0xff]
        %v2539 = vld [vmem:[%s2534 + $0x20] sm:$0xff]
        %v2540 = vld [vmem:[%s2534 + $0x28] sm:$0xff]
        %v2541 = vld [vmem:[%s2534 + $0x30] sm:$0xff]
        %v2542 = vld [vmem:[%s2534 + $0x38] sm:$0xff]
        %v2543 = vld [vmem:[%s2534 + $0x40] sm:$0xff]
        %v2544 = vld [vmem:[%s2534 + $0x48] sm:$0xff]
        %v2545 = vld [vmem:[%s2534 + $0x50] sm:$0xff]
        %v2546 = vld [vmem:[%s2534 + $0x58] sm:$0xff]
        %v2547 = vld [vmem:[%s2534 + $0x60] sm:$0xff]
        %v2548 = vld [vmem:[%s2534 + $0x68] sm:$0xff]
        %v2549 = vld [vmem:[%s2534 + $0x70] sm:$0xff]
        %v2550 = vld [vmem:[%s2534 + $0x78] sm:$0xff]
        %2552 = vset.pattern.permute.xlu0 0
        %2553 = vperm.xlu0 %2552, %v2535
        %v2554 = vpop.permute.xlu0 %2553
        %2557 = vset.pattern.permute.xlu0 0
        %2558 = vperm.xlu0 %2557, %v2536
        %v2559 = vpop.permute.xlu0 %2558
        %2562 = vset.pattern.permute.xlu0 0
        %2563 = vperm.xlu0 %2562, %v2537
        %v2564 = vpop.permute.xlu0 %2563
        %2567 = vset.pattern.permute.xlu0 0
        %2568 = vperm.xlu0 %2567, %v2538
        %v2569 = vpop.permute.xlu0 %2568
        %2572 = vset.pattern.permute.xlu0 0
        %2573 = vperm.xlu0 %2572, %v2539
        %v2574 = vpop.permute.xlu0 %2573
        %2577 = vset.pattern.permute.xlu0 0
        %2578 = vperm.xlu0 %2577, %v2540
        %v2579 = vpop.permute.xlu0 %2578
        %2582 = vset.pattern.permute.xlu0 0
        %2583 = vperm.xlu0 %2582, %v2541
        %v2584 = vpop.permute.xlu0 %2583
        %2587 = vset.pattern.permute.xlu0 0
        %2588 = vperm.xlu0 %2587, %v2542
        %v2589 = vpop.permute.xlu0 %2588
        %2592 = vset.pattern.permute.xlu0 0
        %2593 = vperm.xlu0 %2592, %v2543
        %v2594 = vpop.permute.xlu0 %2593
        %2597 = vset.pattern.permute.xlu0 0
        %2598 = vperm.xlu0 %2597, %v2544
        %v2599 = vpop.permute.xlu0 %2598
        %2602 = vset.pattern.permute.xlu0 0
        %2603 = vperm.xlu0 %2602, %v2545
        %v2604 = vpop.permute.xlu0 %2603
        %2607 = vset.pattern.permute.xlu0 0
        %2608 = vperm.xlu0 %2607, %v2546
        %v2609 = vpop.permute.xlu0 %2608
        %2612 = vset.pattern.permute.xlu0 0
        %2613 = vperm.xlu0 %2612, %v2547
        %v2614 = vpop.permute.xlu0 %2613
        %2617 = vset.pattern.permute.xlu0 0
        %2618 = vperm.xlu0 %2617, %v2548
        %v2619 = vpop.permute.xlu0 %2618
        %2622 = vset.pattern.permute.xlu0 0
        %2623 = vperm.xlu0 %2622, %v2549
        %v2624 = vpop.permute.xlu0 %2623
        %2627 = vset.pattern.permute.xlu0 0
        %2628 = vperm.xlu0 %2627, %v2550
        %v2629 = vpop.permute.xlu0 %2628
        %v2631 = vmul.f32 %v2470, %v2554
        %v2632 = vmul.f32 %v2471, %v2554
        %v2633 = vmul.f32 %v2472, %v2554
        %v2634 = vmul.f32 %v2473, %v2554
        %v2635 = vmul.f32 %v2474, %v2559
        %v2636 = vmul.f32 %v2475, %v2559
        %v2637 = vmul.f32 %v2476, %v2559
        %v2638 = vmul.f32 %v2477, %v2559
        %v2639 = vmul.f32 %v2478, %v2564
        %v2640 = vmul.f32 %v2479, %v2564
        %v2641 = vmul.f32 %v2480, %v2564
        %v2642 = vmul.f32 %v2481, %v2564
        %v2643 = vmul.f32 %v2482, %v2569
        %v2644 = vmul.f32 %v2483, %v2569
        %v2645 = vmul.f32 %v2484, %v2569
        %v2646 = vmul.f32 %v2485, %v2569
        %v2647 = vmul.f32 %v2486, %v2574
        %v2648 = vmul.f32 %v2487, %v2574
        %v2649 = vmul.f32 %v2488, %v2574
        %v2650 = vmul.f32 %v2489, %v2574
        %v2651 = vmul.f32 %v2490, %v2579
        %v2652 = vmul.f32 %v2491, %v2579
        %v2653 = vmul.f32 %v2492, %v2579
        %v2654 = vmul.f32 %v2493, %v2579
        %v2655 = vmul.f32 %v2494, %v2584
        %v2656 = vmul.f32 %v2495, %v2584
        %v2657 = vmul.f32 %v2496, %v2584
        %v2658 = vmul.f32 %v2497, %v2584
        %v2659 = vmul.f32 %v2498, %v2589
        %v2660 = vmul.f32 %v2499, %v2589
        %v2661 = vmul.f32 %v2500, %v2589
        %v2662 = vmul.f32 %v2501, %v2589
        %v2663 = vmul.f32 %v2502, %v2594
        %v2664 = vmul.f32 %v2503, %v2594
        %v2665 = vmul.f32 %v2504, %v2594
        %v2666 = vmul.f32 %v2505, %v2594
        %v2667 = vmul.f32 %v2506, %v2599
        %v2668 = vmul.f32 %v2507, %v2599
        %v2669 = vmul.f32 %v2508, %v2599
        %v2670 = vmul.f32 %v2509, %v2599
        %v2671 = vmul.f32 %v2510, %v2604
        %v2672 = vmul.f32 %v2511, %v2604
        %v2673 = vmul.f32 %v2512, %v2604
        %v2674 = vmul.f32 %v2513, %v2604
        %v2675 = vmul.f32 %v2514, %v2609
        %v2676 = vmul.f32 %v2515, %v2609
        %v2677 = vmul.f32 %v2516, %v2609
        %v2678 = vmul.f32 %v2517, %v2609
        %v2679 = vmul.f32 %v2518, %v2614
        %v2680 = vmul.f32 %v2519, %v2614
        %v2681 = vmul.f32 %v2520, %v2614
        %v2682 = vmul.f32 %v2521, %v2614
        %v2683 = vmul.f32 %v2522, %v2619
        %v2684 = vmul.f32 %v2523, %v2619
        %v2685 = vmul.f32 %v2524, %v2619
        %v2686 = vmul.f32 %v2525, %v2619
        %v2687 = vmul.f32 %v2526, %v2624
        %v2688 = vmul.f32 %v2527, %v2624
        %v2689 = vmul.f32 %v2528, %v2624
        %v2690 = vmul.f32 %v2529, %v2624
        %v2691 = vmul.f32 %v2530, %v2629
        %v2692 = vmul.f32 %v2531, %v2629
        %v2693 = vmul.f32 %v2532, %v2629
        %v2694 = vmul.f32 %v2533, %v2629
        %v2695 = vadd.f32 %v2631, %v2635
        %v2696 = vadd.f32 %v2695, %v2639
        %v2697 = vadd.f32 %v2696, %v2643
        %v2698 = vadd.f32 %v2697, %v2647
        %v2699 = vadd.f32 %v2698, %v2651
        %v2700 = vadd.f32 %v2699, %v2655
        %v2701 = vadd.f32 %v2700, %v2659
        %v2702 = vadd.f32 %v2701, %v2663
        %v2703 = vadd.f32 %v2702, %v2667
        %v2704 = vadd.f32 %v2703, %v2671
        %v2705 = vadd.f32 %v2704, %v2675
        %v2706 = vadd.f32 %v2705, %v2679
        %v2707 = vadd.f32 %v2706, %v2683
        %v2708 = vadd.f32 %v2707, %v2687
        %v2709 = vadd.f32 %v2708, %v2691
        %v2710 = vrot.slane %v2709, 4
        %v2711 = vadd.f32 %v2709, %v2710
        %v2712 = vrot.slane %v2711, 2
        %v2713 = vadd.f32 %v2711, %v2712
        %v2714 = vrot.slane %v2713, 1
        %v2715 = vadd.f32 %v2713, %v2714
        %v2716 = vadd.f32 %v2632, %v2636
        %v2717 = vadd.f32 %v2716, %v2640
        %v2718 = vadd.f32 %v2717, %v2644
        %v2719 = vadd.f32 %v2718, %v2648
        %v2720 = vadd.f32 %v2719, %v2652
        %v2721 = vadd.f32 %v2720, %v2656
        %v2722 = vadd.f32 %v2721, %v2660
        %v2723 = vadd.f32 %v2722, %v2664
        %v2724 = vadd.f32 %v2723, %v2668
        %v2725 = vadd.f32 %v2724, %v2672
        %v2726 = vadd.f32 %v2725, %v2676
        %v2727 = vadd.f32 %v2726, %v2680
        %v2728 = vadd.f32 %v2727, %v2684
        %v2729 = vadd.f32 %v2728, %v2688
        %v2730 = vadd.f32 %v2729, %v2692
        %v2731 = vrot.slane %v2730, 4
        %v2732 = vadd.f32 %v2730, %v2731
        %v2733 = vrot.slane %v2732, 2
        %v2734 = vadd.f32 %v2732, %v2733
        %v2735 = vrot.slane %v2734, 1
        %v2736 = vadd.f32 %v2734, %v2735
        %v2737 = vadd.f32 %v2633, %v2637
        %v2738 = vadd.f32 %v2737, %v2641
        %v2739 = vadd.f32 %v2738, %v2645
        %v2740 = vadd.f32 %v2739, %v2649
        %v2741 = vadd.f32 %v2740, %v2653
        %v2742 = vadd.f32 %v2741, %v2657
        %v2743 = vadd.f32 %v2742, %v2661
        %v2744 = vadd.f32 %v2743, %v2665
        %v2745 = vadd.f32 %v2744, %v2669
        %v2746 = vadd.f32 %v2745, %v2673
        %v2747 = vadd.f32 %v2746, %v2677
        %v2748 = vadd.f32 %v2747, %v2681
        %v2749 = vadd.f32 %v2748, %v2685
        %v2750 = vadd.f32 %v2749, %v2689
        %v2751 = vadd.f32 %v2750, %v2693
        %v2752 = vrot.slane %v2751, 4
        %v2753 = vadd.f32 %v2751, %v2752
        %v2754 = vrot.slane %v2753, 2
        %v2755 = vadd.f32 %v2753, %v2754
        %v2756 = vrot.slane %v2755, 1
        %v2757 = vadd.f32 %v2755, %v2756
        %v2758 = vadd.f32 %v2634, %v2638
        %v2759 = vadd.f32 %v2758, %v2642
        %v2760 = vadd.f32 %v2759, %v2646
        %v2761 = vadd.f32 %v2760, %v2650
        %v2762 = vadd.f32 %v2761, %v2654
        %v2763 = vadd.f32 %v2762, %v2658
        %v2764 = vadd.f32 %v2763, %v2662
        %v2765 = vadd.f32 %v2764, %v2666
        %v2766 = vadd.f32 %v2765, %v2670
        %v2767 = vadd.f32 %v2766, %v2674
        %v2768 = vadd.f32 %v2767, %v2678
        %v2769 = vadd.f32 %v2768, %v2682
        %v2770 = vadd.f32 %v2769, %v2686
        %v2771 = vadd.f32 %v2770, %v2690
        %v2772 = vadd.f32 %v2771, %v2694
        %v2773 = vrot.slane %v2772, 4
        %v2774 = vadd.f32 %v2772, %v2773
        %v2775 = vrot.slane %v2774, 2
        %v2776 = vadd.f32 %v2774, %v2775
        %v2777 = vrot.slane %v2776, 1
        %v2778 = vadd.f32 %v2776, %v2777
        %v2779 = vadd.f32 %v2144, %v2715
        %v2780 = vadd.f32 %v2145, %v2736
        %v2781 = vadd.f32 %v2146, %v2757
        %v2782 = vadd.f32 %v2147, %v2778
        %s2783 = sld [smem:[#allocation2]]
        %v2784 = vstv %s2783
        %v2785 = vadd.f32 %v2779, %v2784
        %v2786 = vadd.f32 %v2780, %v2784
        %v2787 = vadd.f32 %v2781, %v2784
        %v2788 = vadd.f32 %v2782, %v2784
        %v2793 = vcombine.low %v2785, %v2786
        %v2794 = vcombine.low %v2787, %v2788
        %v2796 = vunpack.c.l.s4 1966171168
        %v2797 = vunpack.c.0.s8 %v2796
        %v2798 = vlaneseq
        %v2799 = vshrl.u32 %v2798, 7
        %v2800 = vsub.s32 %v2797, %v2799
        %v2801 = vrot.slane %v2793, %v2800
        %v2803 = vunpack.c.l.s4 1966171168
        %v2804 = vunpack.c.0.s8 %v2803
        %v2805 = vlaneseq
        %v2806 = vshrl.u32 %v2805, 7
        %v2807 = vsub.s32 %v2804, %v2806
        %v2808 = vrot.slane %v2794, %v2807
        %v2809 = vcombine.low %v2801, %v2808
        %v2811 = vunpack.c.l.s4 1966171168
        %v2812 = vunpack.c.0.s8 %v2811
        %v2813 = vlaneseq
        %v2814 = vshrl.u32 %v2813, 7
        %v2815 = vsub.s32 %v2812, %v2814
        %v2816 = vrot.slane %v2809, %v2815
        %v2818 = vlaneseq
        %vm2819 = vcmp.ge.s32.totalorder %v2818, 0
        %vm2820 = vcmp.lt.s32.totalorder %v2818, 512
        %vm2821 = vmand %vm2819, %vm2820
        %2822 = vst.msk [vmem:[%s217] sm:$0xf] %vm2821, %v2816
        %s2823 = sand.u32 %s138, 1
        %s2824 = scalar_lea.sflag [#allocation4], %s2823
        %s2825 = sand.u32 %s138, 1
        %s2826 = smul.addr %s2825, 4
        %s2827 = scalar_lea.vmem [#allocation3], %s2826
        // Predicated region
        $region41: #{tpu_custom_call.1} parent=39 // pred_check
          %p2828 = pneg %p148
        $region42: #{tpu_custom_call.1} parent=39 // pred_check_branch
          %2830 = sbr.rel (%p2828) target = $region44
        $region43: #{tpu_custom_call.1} parent=39 // pred_region
          %s2831 = smul.u32 4, %s20
          %s2833 = ssub.s32 64, 64
          %2834 = vsyncadd %s2824, %s2833
          %s2835 = smul.addr %s2831, 16
          %s2836 = scalar_lea.hbm %s5, %s2835
          %s2838 = sshll.u32 %s2827, 4
          %s2839 = int_to_ptr.vmem [resolvable:$true] %s2838
          %2841 = dma.vmem_to_hbm [thread:$0]  %s2839, 64, %s2836, %s2824
        $region44: #{tpu_custom_call.1} parent=39 // pred_fallthru
          _
      $region40: #{tpu_custom_call.1} parent=5 // pred_fallthru
        _
      %p2842 = scmp.le.s32.totalorder 2, %s15
      // Predicated region
      $region45: #{tpu_custom_call.1} parent=5 // pred_check
        %p2843 = pneg %p2842
      $region46: #{tpu_custom_call.1} parent=5 // pred_check_branch
        %2845 = sbr.rel (%p2843) target = $region48
      $region47: #{tpu_custom_call.1} parent=5 // pred_region
        %s2846 = ssub.s32 %s15, 2
        // Predicated region
        $region49: #{tpu_custom_call.1} parent=47 // pred_check
          %p2847 = pneg %p154
        $region50: #{tpu_custom_call.1} parent=47 // pred_check_branch
          %2849 = sbr.rel (%p2847) target = $region52
        $region51: #{tpu_custom_call.1} parent=47 // pred_region
          %s2850 = sand.u32 %s139, 1
          %s2851 = scalar_lea.sflag [#allocation4], %s2850
          %s2852 = sand.u32 %s139, 1
          %s2853 = smul.addr %s2852, 4
          %s2854 = scalar_lea.vmem [#allocation3], %s2853
          %2855 = dma.done %s2851, 64
        $region52: #{tpu_custom_call.1} parent=47 // pred_fallthru
          _
      $region48: #{tpu_custom_call.1} parent=5 // pred_fallthru
        _
    $region6: #{tpu_custom_call.1} parent=1 // loop_footer
      %s19 = sadd.s32 1, %s15
    $region7: #{tpu_custom_call.1} parent=1 // loop_footer_branch
      %14 = sbr.rel target = $region3
    $region8: #{tpu_custom_call.1} parent=1 // loop_exit
      _
    %2856 = vsyncpa [#allocation4], 1
    %s2857 = scalar_lea.sflag [#allocation4], 1
    %2858 = vsyncpa %s2857, 1

</llo_original>
